<compile_context>
chip_gen: v5e
topology: v5e:2x2
jax: 0.10.0
libtpu: 0.0.40
codegen_flags: <defaults>
</compile_context>

<pallas_src>
import functools

import jax
import jax.numpy as jnp
from jax.experimental import pallas as pl
from jax.experimental.pallas import tpu as pltpu

D_IN, D_H1, D_H2 = 768, 512, 256


def chessnn_kernel(x_ref, w1_ref, b1_ref, w2_ref, b2_ref, w3_ref, b3_ref, o_ref):
    # Cast the activation tile to the weight compute dtype (bf16) in-register,
    # right before the MXU pass; the HBM stream keeps the caller's dtype.
    x = x_ref[...].astype(w1_ref.dtype)

    # Layer 1: (Bt,768) @ (768,512) on the MXU (bf16 in, f32 accumulate);
    # bias + relu on the VPU in f32.
    h1 = jnp.dot(x, w1_ref[...], preferred_element_type=jnp.float32)
    h1 = jnp.maximum(h1 + b1_ref[...], 0.0)

    # Layer 2: (Bt,512) @ (512,256).
    h2 = jnp.dot(h1.astype(w2_ref.dtype), w2_ref[...],
                 preferred_element_type=jnp.float32)
    h2 = jnp.maximum(h2 + b2_ref[...], 0.0)

    # Layer 3 (N=1): VPU multiply, VPU fold of the two 128-lane halves
    # (lane-aligned slices, no relayout), then a single 128-lane XLU reduce.
    # Keeps the MXU free of a 1-live-column pass and halves the XLU chain that
    # shares the vector-extended slots with vmatmul pushes.
    prod = h2 * w3_ref[...]                        # (Bt, 256)  VPU
    folded = prod[:, :128] + prod[:, 128:]         # (Bt, 128)  VPU
    h3 = jnp.sum(folded, axis=-1, keepdims=True)   # (Bt, 1)    XLU lane reduce
    o_ref[...] = jnp.tanh(h3 + b3_ref[...])        # EUP tanh, f32 epilogue


def _round_up(n, m):
    return ((n + m - 1) // m) * m


def _pick_batch_tile(batch):
    # Per-grid-step overhead ~0.35us -> large MXU-aligned tiles for big
    # batches, but keep >=2 grid steps whenever possible so the "parallel"
    # batch axis shards across both v7x TensorCores.
    if batch >= 4096:
        return 1024
    if batch >= 2048:
        return 512
    if batch >= 512:
        return 256
    if batch >= 32:
        return _round_up(pl.cdiv(batch, 2), 16)   # two tiles, bf16-packed rows
    if batch >= 16:
        return 16
    return batch                                   # tiny batch: one full-dim block


@functools.partial(jax.jit, static_argnames=("batch_tile",))
def chessnn_forward(x, params, *, batch_tile=None):
    """Fused ChessNN forward.

    x: (B, 768) float32 (or bfloat16 — binary chess planes cast losslessly).
    params: output of prepare_kernel_params (bf16 weights, f32 biases).
    Returns (B, 1) float32.
    """
    B, d_in = x.shape
    assert d_in == D_IN
    if batch_tile is None:
        batch_tile = _pick_batch_tile(B)
    grid = (pl.cdiv(B, batch_tile),)
    n_rows = grid[0] * batch_tile

    w1, b1 = params["w1"], params["b1"]
    w2, b2 = params["w2"], params["b2"]
    w3, b3 = params["w3"], params["b3"]

    def _resident(shape):
        # Constant block index -> DMA'd once, resident in VMEM for the whole grid.
        return pl.BlockSpec(shape, lambda i: (0, 0))

    cost = pl.CostEstimate(
        flops=2 * n_rows * (D_IN * D_H1 + D_H1 * D_H2 + D_H2),
        transcendentals=n_rows,  # one tanh per output row
        bytes_accessed=(n_rows * D_IN * x.dtype.itemsize          # activations in
                        + w1.size * w1.dtype.itemsize             # w1
                        + w2.size * w2.dtype.itemsize             # w2
                        + (D_H1 + D_H2 + D_H2 + 1) * 4            # b1, b2, w3, b3
                        + n_rows * 4),                            # output
    )

    return pl.pallas_call(
        chessnn_kernel,
        out_shape=jax.ShapeDtypeStruct((B, 1), jnp.float32),
        grid_spec=pltpu.PrefetchScalarGridSpec(
            num_scalar_prefetch=0,
            grid=grid,
            in_specs=[
                pl.BlockSpec((batch_tile, D_IN), lambda i: (i, 0)),  # x tile
                _resident((D_IN, D_H1)),   # w1 (bf16)
                _resident((1, D_H1)),      # b1 (f32)
                _resident((D_H1, D_H2)),   # w2 (bf16)
                _resident((1, D_H2)),      # b2 (f32)
                _resident((1, D_H2)),      # w3 row vector (f32)
                _resident((1, 1)),         # b3 (f32)
            ],
            # Partial last block: rows past B are masked on writeback.
            out_specs=pl.BlockSpec((batch_tile, 1), lambda i: (i, 0)),
        ),
        compiler_params=pltpu.CompilerParams(
            dimension_semantics=("parallel",),  # batch tiles independent -> megacore
        ),
        cost_estimate=cost,
    )(x, w1, b1, w2, b2, w3, b3)


def init_params(key):
    """f32 master weights, PyTorch-default-style init (uniform +/-1/sqrt(fan_in)),
    stored as (in, out) — the transpose of nn.Linear's (out, in) weight."""
    def linear(k, fan_in, fan_out):
        kw, kb = jax.random.split(k)
        bound = 1.0 / jnp.sqrt(fan_in)
        w = jax.random.uniform(kw, (fan_in, fan_out), jnp.float32, -bound, bound)
        b = jax.random.uniform(kb, (fan_out,), jnp.float32, -bound, bound)
        return w, b

    k1, k2, k3 = jax.random.split(key, 3)
    w1, b1 = linear(k1, D_IN, D_H1)
    w2, b2 = linear(k2, D_H1, D_H2)
    w3, b3 = linear(k3, D_H2, 1)
    return {"w1": w1, "b1": b1, "w2": w2, "b2": b2, "w3": w3, "b3": b3}


def prepare_kernel_params(p, compute_dtype=jnp.bfloat16):
    """One-time (outside the hot path) conversion to the kernel layout:
    bf16 matmul weights, f32 biases as (1, N) rows, layer-3 weight as an f32
    (1, 256) row vector for the VPU/XLU mul-reduce."""
    return {
        "w1": p["w1"].astype(compute_dtype),
        "b1": p["b1"].reshape(1, D_H1).astype(jnp.float32),
        "w2": p["w2"].astype(compute_dtype),
        "b2": p["b2"].reshape(1, D_H2).astype(jnp.float32),
        "w3": p["w3"].reshape(1, D_H2).astype(jnp.float32),
        "b3": p["b3"].reshape(1, 1).astype(jnp.float32),
    }


def reference_forward(x, p, *, use_bf16=False):
    """Pure-JAX reference on the f32 master params. With use_bf16=True it
    mimics the kernel's precision (bf16 matmul inputs, f32 accumulation)."""
    c = (lambda a: a.astype(jnp.bfloat16)) if use_bf16 else (lambda a: a)
    h1 = jnp.maximum(
        jnp.dot(c(x), c(p["w1"]), preferred_element_type=jnp.float32)
        + p["b1"].reshape(1, -1), 0.0)
    h2 = jnp.maximum(
        jnp.dot(c(h1), c(p["w2"]), preferred_element_type=jnp.float32)
        + p["b2"].reshape(1, -1), 0.0)
    return jnp.tanh(
        jnp.dot(h2, p["w3"], preferred_element_type=jnp.float32)
        + p["b3"].reshape(1, -1))


if __name__ == "__main__":
    key = jax.random.PRNGKey(0)
    k_params, k_x = jax.random.split(key)
    master = init_params(k_params)               # f32, torch-equivalent init
    kparams = prepare_kernel_params(master)      # one-time bf16/layout conversion

    # Small shapes: B=16 exercises a full bf16-packed tile; B=5 exercises the
    # tiny / full-dim-block path. Both stay well within the spec (x: (B, 768)).
    for case, B in enumerate((16, 5)):
        x = jax.random.normal(jax.random.fold_in(k_x, case), (B, D_IN), jnp.float32)
        out = jax.block_until_ready(chessnn_forward(x, kparams))
        assert out.shape == (B, 1), out.shape

        # Tight check vs a precision-matched (bf16-matmul / f32-accumulate) reference...
        ref_bf16 = reference_forward(x, master, use_bf16=True)
        assert jnp.allclose(out, ref_bf16, atol=2e-3, rtol=0.0), f"bf16-ref mismatch (B={B})"
        # ...and a looser sanity check vs the pure-f32 torch-equivalent math.
        ref_f32 = reference_forward(x, master, use_bf16=False)
        assert jnp.allclose(out, ref_f32, atol=5e-2, rtol=0.0), f"f32-ref mismatch (B={B})"

    print("KERNEL_OK")
</pallas_src>

<mosaic_0001>
module attributes {stable_mosaic.version = 11 : i64} {
  func.func @chessnn_kernel(%arg0: i32, %arg1: memref<16x768xf32, #tpu.memory_space<vmem>>, %arg2: memref<768x512xbf16, #tpu.memory_space<vmem>>, %arg3: memref<1x512xf32, #tpu.memory_space<vmem>>, %arg4: memref<512x256xbf16, #tpu.memory_space<vmem>>, %arg5: memref<1x256xf32, #tpu.memory_space<vmem>>, %arg6: memref<1x256xf32, #tpu.memory_space<vmem>>, %arg7: memref<1x1xf32, #tpu.memory_space<vmem>>, %arg8: memref<16x1xf32, #tpu.memory_space<vmem>>) attributes {dimension_semantics = [#tpu.dimension_semantics<parallel>], iteration_bounds = array<i64: 1>, scalar_prefetch = 0 : i64, scratch_operands = 0 : i64, tpu.core_type = #tpu.core_type<tc>, window_params = [{transform_indices = @transform_0, window_bounds = array<i64: 16, 768>}, {pipeline_mode = #tpu.pipeline_mode<synchronous>, transform_indices = @transform_1, window_bounds = array<i64: 768, 512>}, {pipeline_mode = #tpu.pipeline_mode<synchronous>, transform_indices = @transform_2, window_bounds = array<i64: 1, 512>}, {pipeline_mode = #tpu.pipeline_mode<synchronous>, transform_indices = @transform_3, window_bounds = array<i64: 512, 256>}, {pipeline_mode = #tpu.pipeline_mode<synchronous>, transform_indices = @transform_4, window_bounds = array<i64: 1, 256>}, {pipeline_mode = #tpu.pipeline_mode<synchronous>, transform_indices = @transform_5, window_bounds = array<i64: 1, 256>}, {pipeline_mode = #tpu.pipeline_mode<synchronous>, transform_indices = @transform_6, window_bounds = array<i64: 1, 1>}, {transform_indices = @transform_7, window_bounds = array<i64: 16, 1>}]} {
    %c0 = arith.constant 0 : index
    %c0_0 = arith.constant 0 : index
    %0 = vector.load %arg1[%c0, %c0_0] : memref<16x768xf32, #tpu.memory_space<vmem>>, vector<16x768xf32>
    %1 = arith.truncf %0 : vector<16x768xf32> to vector<16x768xbf16>
    %c0_1 = arith.constant 0 : index
    %c0_2 = arith.constant 0 : index
    %2 = vector.load %arg2[%c0_1, %c0_2] : memref<768x512xbf16, #tpu.memory_space<vmem>>, vector<768x512xbf16>
    %cst = arith.constant dense<0.000000e+00> : vector<16x512xf32>
    %3 = tpu.matmul %1, %2, %cst {dimension_numbers = #tpu.dot_dimension_numbers<[1], [0], [0], [1], [0, 0, 1, 1], [], []>} : vector<16x768xbf16>, vector<768x512xbf16>, vector<16x512xf32> -> vector<16x512xf32>
    %c0_3 = arith.constant 0 : index
    %c0_4 = arith.constant 0 : index
    %4 = vector.load %arg3[%c0_3, %c0_4] : memref<1x512xf32, #tpu.memory_space<vmem>>, vector<1x512xf32>
    %5 = vector.broadcast %4 : vector<1x512xf32> to vector<16x512xf32>
    %6 = arith.addf %3, %5 : vector<16x512xf32>
    %cst_5 = arith.constant 0.000000e+00 : f32
    %7 = vector.broadcast %cst_5 : f32 to vector<16x512xf32>
    %8 = arith.maximumf %6, %7 : vector<16x512xf32>
    %9 = arith.truncf %8 : vector<16x512xf32> to vector<16x512xbf16>
    %c0_6 = arith.constant 0 : index
    %c0_7 = arith.constant 0 : index
    %10 = vector.load %arg4[%c0_6, %c0_7] : memref<512x256xbf16, #tpu.memory_space<vmem>>, vector<512x256xbf16>
    %cst_8 = arith.constant dense<0.000000e+00> : vector<16x256xf32>
    %11 = tpu.matmul %9, %10, %cst_8 {dimension_numbers = #tpu.dot_dimension_numbers<[1], [0], [0], [1], [0, 0, 1, 1], [], []>} : vector<16x512xbf16>, vector<512x256xbf16>, vector<16x256xf32> -> vector<16x256xf32>
    %c0_9 = arith.constant 0 : index
    %c0_10 = arith.constant 0 : index
    %12 = vector.load %arg5[%c0_9, %c0_10] : memref<1x256xf32, #tpu.memory_space<vmem>>, vector<1x256xf32>
    %13 = vector.broadcast %12 : vector<1x256xf32> to vector<16x256xf32>
    %14 = arith.addf %11, %13 : vector<16x256xf32>
    %cst_11 = arith.constant 0.000000e+00 : f32
    %15 = vector.broadcast %cst_11 : f32 to vector<16x256xf32>
    %16 = arith.maximumf %14, %15 : vector<16x256xf32>
    %c0_12 = arith.constant 0 : index
    %c0_13 = arith.constant 0 : index
    %17 = vector.load %arg6[%c0_12, %c0_13] : memref<1x256xf32, #tpu.memory_space<vmem>>, vector<1x256xf32>
    %18 = vector.broadcast %17 : vector<1x256xf32> to vector<16x256xf32>
    %19 = arith.mulf %16, %18 : vector<16x256xf32>
    %20 = vector.extract_strided_slice %19 {offsets = [0, 0], sizes = [16, 128], strides = [1, 1]} : vector<16x256xf32> to vector<16x128xf32>
    %21 = vector.extract_strided_slice %19 {offsets = [0, 128], sizes = [16, 128], strides = [1, 1]} : vector<16x256xf32> to vector<16x128xf32>
    %22 = arith.addf %20, %21 : vector<16x128xf32>
    %cst_14 = arith.constant dense<0.000000e+00> : vector<16xf32>
    %23 = vector.multi_reduction <add>, %22, %cst_14 [1] : vector<16x128xf32> to vector<16xf32>
    %24 = vector.shape_cast %23 : vector<16xf32> to vector<16x1xf32>
    %c0_15 = arith.constant 0 : index
    %c0_16 = arith.constant 0 : index
    %25 = vector.load %arg7[%c0_15, %c0_16] : memref<1x1xf32, #tpu.memory_space<vmem>>, vector<1x1xf32>
    %26 = vector.broadcast %25 : vector<1x1xf32> to vector<16x1xf32>
    %27 = arith.addf %24, %26 : vector<16x1xf32>
    %28 = math.tanh %27 : vector<16x1xf32>
    %c0_17 = arith.constant 0 : index
    %c0_18 = arith.constant 0 : index
    %29 = vector.load %arg8[%c0_17, %c0_18] : memref<16x1xf32, #tpu.memory_space<vmem>>, vector<16x1xf32>
    tpu.vector_store %arg8[%c0_17, %c0_18], %28 {strides = array<i32>} : memref<16x1xf32, #tpu.memory_space<vmem>>, vector<16x1xf32>,
    return
  }
  func.func @transform_0(%arg0: i32) -> (i32, i32) {
    %c0_i32 = arith.constant 0 : i32
    %c0_i32_0 = arith.constant 0 : i32
    return %arg0, %c0_i32 : i32, i32
  }
  func.func @transform_1(%arg0: i32) -> (i32, i32) {
    %c0_i32 = arith.constant 0 : i32
    %c0_i32_0 = arith.constant 0 : i32
    %c0_i32_1 = arith.constant 0 : i32
    return %c0_i32, %c0_i32_0 : i32, i32
  }
  func.func @transform_2(%arg0: i32) -> (i32, i32) {
    %c0_i32 = arith.constant 0 : i32
    %c0_i32_0 = arith.constant 0 : i32
    %c0_i32_1 = arith.constant 0 : i32
    return %c0_i32, %c0_i32_0 : i32, i32
  }
  func.func @transform_3(%arg0: i32) -> (i32, i32) {
    %c0_i32 = arith.constant 0 : i32
    %c0_i32_0 = arith.constant 0 : i32
    %c0_i32_1 = arith.constant 0 : i32
    return %c0_i32, %c0_i32_0 : i32, i32
  }
  func.func @transform_4(%arg0: i32) -> (i32, i32) {
    %c0_i32 = arith.constant 0 : i32
    %c0_i32_0 = arith.constant 0 : i32
    %c0_i32_1 = arith.constant 0 : i32
    return %c0_i32, %c0_i32_0 : i32, i32
  }
  func.func @transform_5(%arg0: i32) -> (i32, i32) {
    %c0_i32 = arith.constant 0 : i32
    %c0_i32_0 = arith.constant 0 : i32
    %c0_i32_1 = arith.constant 0 : i32
    return %c0_i32, %c0_i32_0 : i32, i32
  }
  func.func @transform_6(%arg0: i32) -> (i32, i32) {
    %c0_i32 = arith.constant 0 : i32
    %c0_i32_0 = arith.constant 0 : i32
    %c0_i32_1 = arith.constant 0 : i32
    return %c0_i32, %c0_i32_0 : i32, i32
  }
  func.func @transform_7(%arg0: i32) -> (i32, i32) {
    %c0_i32 = arith.constant 0 : i32
    %c0_i32_0 = arith.constant 0 : i32
    return %arg0, %c0_i32 : i32, i32
  }
}

</mosaic_0001>

<llo_original>
// kernel: chessnn_forward.1
$region0: #{chessnn_forward.1}
  #allocation0 [shape = 'u32[]', space=smem, size = 0x4, offset = 0x4, fixed_abs, tag = 'smem constant byte address 0x4 - core index']
  #allocation1 [shape = 'u32[72,128]{1,0:T(1,128)}', space=vmem, size = 0x9000, scoped, tag = 'internal scratch']
  #allocation2 [shape = 'f32[1,1]{1,0:T(1,128)S(1)}', space=vmem, size = 0x200, scoped, tag = 'scoped memory for chessnn_forward.1']
  %s0 = inlined_call_operand.hbm [shape: f32[16,768], index: 0, kind: input, shape index: {}]
  %s1 = inlined_call_operand.hbm [shape: bf16[768,512], index: 1, kind: input, shape index: {}]
  %s2 = inlined_call_operand.hbm [shape: f32[1,512], index: 2, kind: input, shape index: {}]
  %s3 = inlined_call_operand.hbm [shape: bf16[512,256], index: 3, kind: input, shape index: {}]
  %s4 = inlined_call_operand.vmem [shape: f32[1,256], index: 4, kind: input, shape index: {}]
  %s5 = inlined_call_operand.vmem [shape: f32[1,256], index: 5, kind: input, shape index: {}]
  %s6 = inlined_call_operand.<no memory space> [shape: f32[1,1], index: 6, kind: input, shape index: {}]
  %s7 = inlined_call_operand.vmem [shape: f32[16,1], index: 7, kind: output, shape index: {}]
  %s8 = sld [smem:[#allocation0]]
  $region54: #{chessnn_forward.1} parent=0
    _
  %s10 = ssub.s32 1, %s8
  %s11 = scalar_select 0, %s10, %s8
  %v12 = vstv %s6
  %13 = vst [vmem:[#allocation2] sm:$0x1] %v12
  $region1: #{chessnn_forward.1} parent=0
    #allocation3 [shape = 'u8[49152]{0}', space=vmem, size = 0xc000, scoped, tag = 'input window, operand 0, single buffered']
    #allocation4 [shape = 's32[1]{0}', space=sflag, size = 0x4, scoped, tag = 'scoped memory for chessnn_forward.1']
    #allocation5 [shape = 'u8[786432]{0}', space=vmem, size = 0xc0000, scoped, tag = 'input window, operand 1, single buffered']
    #allocation6 [shape = 's32[1]{0}', space=sflag, size = 0x4, scoped, tag = 'scoped memory for chessnn_forward.1']
    #allocation7 [shape = 'u8[2048]{0}', space=vmem, size = 0x800, scoped, tag = 'input window, operand 2, single buffered']
    #allocation8 [shape = 'u8[262144]{0}', space=vmem, size = 0x40000, scoped, tag = 'input window, operand 3, single buffered']
    #allocation9 [shape = 's32[1]{0}', space=sflag, size = 0x4, scoped, tag = 'scoped memory for chessnn_forward.1']
    %14 = vsyncpa [#allocation4], 0
    %15 = vsyncpa [#allocation6], 0
    %16 = vsyncpa [#allocation9], 0
    // Predicated region
    $region2: #{chessnn_forward.1} parent=1 // pred_check
      _
    $region3: #{chessnn_forward.1} parent=1 // pred_check_branch
      %18 = sbr.rel (0) target = $region5
    $region4: #{chessnn_forward.1} parent=1 // pred_region
      %20 = vsyncadd [#allocation4], 0
      %s21 = sshll.u32 %s0, 4
      %s22 = int_to_ptr.hbm [resolvable:$true] %s21
      %s23 = sshll.u32 [#allocation3], 4
      %s24 = int_to_ptr.vmem [resolvable:$true] %s23
      %29 = dma.hbm_to_vmem [thread:$0]  %s22, 1536, %s24, [#allocation4], 768, 768, 48
    $region5: #{chessnn_forward.1} parent=1 // pred_fallthru
      _
    // Predicated region
    $region6: #{chessnn_forward.1} parent=1 // pred_check
      _
    $region7: #{chessnn_forward.1} parent=1 // pred_check_branch
      %31 = sbr.rel (0) target = $region9
    $region8: #{chessnn_forward.1} parent=1 // pred_region
      %33 = vsyncadd [#allocation6], 0
      %s34 = sshll.u32 %s1, 4
      %s35 = int_to_ptr.hbm [resolvable:$true] %s34
      %s36 = sshll.u32 [#allocation5], 4
      %s37 = int_to_ptr.vmem [resolvable:$true] %s36
      %42 = dma.hbm_to_vmem [thread:$0]  %s35, 24576, %s37, [#allocation6], 256, 256, 16
    $region9: #{chessnn_forward.1} parent=1 // pred_fallthru
      _
    // Predicated region
    $region10: #{chessnn_forward.1} parent=1 // pred_check
      _
    $region11: #{chessnn_forward.1} parent=1 // pred_check_branch
      %44 = sbr.rel (0) target = $region13
    $region12: #{chessnn_forward.1} parent=1 // pred_region
      %46 = vsyncadd [#allocation6], 0
      %s48 = sshll.u32 %s2, 4
      %s49 = int_to_ptr.hbm [resolvable:$true] %s48
      %s50 = sshll.u32 [#allocation7], 4
      %s51 = int_to_ptr.vmem [resolvable:$true] %s50
      %53 = dma.hbm_to_vmem [thread:$0]  %s49, 64, %s51, [#allocation6]
    $region13: #{chessnn_forward.1} parent=1 // pred_fallthru
      _
    // Predicated region
    $region14: #{chessnn_forward.1} parent=1 // pred_check
      _
    $region15: #{chessnn_forward.1} parent=1 // pred_check_branch
      %55 = sbr.rel (0) target = $region17
    $region16: #{chessnn_forward.1} parent=1 // pred_region
      %57 = vsyncadd [#allocation9], 0
      %s58 = sshll.u32 %s3, 4
      %s59 = int_to_ptr.hbm [resolvable:$true] %s58
      %s60 = sshll.u32 [#allocation8], 4
      %s61 = int_to_ptr.vmem [resolvable:$true] %s60
      %66 = dma.hbm_to_vmem [thread:$0]  %s59, 8192, %s61, [#allocation9], 128, 128, 8
    $region17: #{chessnn_forward.1} parent=1 // pred_fallthru
      _
    // Predicated region
    $region18: #{chessnn_forward.1} parent=1 // pred_check
      _
    $region19: #{chessnn_forward.1} parent=1 // pred_check_branch
      %68 = sbr.rel (0) target = $region21
    $region20: #{chessnn_forward.1} parent=1 // pred_region
      _
    $region21: #{chessnn_forward.1} parent=1 // pred_fallthru
      _
    // Predicated region
    $region22: #{chessnn_forward.1} parent=1 // pred_check
      _
    $region23: #{chessnn_forward.1} parent=1 // pred_check_branch
      %70 = sbr.rel (0) target = $region25
    $region24: #{chessnn_forward.1} parent=1 // pred_region
      _
    $region25: #{chessnn_forward.1} parent=1 // pred_fallthru
      _
    // Predicated region
    $region26: #{chessnn_forward.1} parent=1 // pred_check
      _
    $region27: #{chessnn_forward.1} parent=1 // pred_check_branch
      %72 = sbr.rel (0) target = $region29
    $region28: #{chessnn_forward.1} parent=1 // pred_region
      _
    $region29: #{chessnn_forward.1} parent=1 // pred_fallthru
      _
    // Predicated region
    $region30: #{chessnn_forward.1} parent=1 // pred_check
      _
    $region31: #{chessnn_forward.1} parent=1 // pred_check_branch
      %74 = sbr.rel (0) target = $region33
    $region32: #{chessnn_forward.1} parent=1 // pred_region
      %76 = dma.done [#allocation4], 1536
    $region33: #{chessnn_forward.1} parent=1 // pred_fallthru
      _
    // Predicated region
    $region34: #{chessnn_forward.1} parent=1 // pred_check
      _
    $region35: #{chessnn_forward.1} parent=1 // pred_check_branch
      %78 = sbr.rel (0) target = $region37
    $region36: #{chessnn_forward.1} parent=1 // pred_region
      %80 = dma.done [#allocation6], 24576
    $region37: #{chessnn_forward.1} parent=1 // pred_fallthru
      _
    // Predicated region
    $region38: #{chessnn_forward.1} parent=1 // pred_check
      _
    $region39: #{chessnn_forward.1} parent=1 // pred_check_branch
      %82 = sbr.rel (0) target = $region41
    $region40: #{chessnn_forward.1} parent=1 // pred_region
      %84 = dma.done [#allocation6], 64
    $region41: #{chessnn_forward.1} parent=1 // pred_fallthru
      _
    // Predicated region
    $region42: #{chessnn_forward.1} parent=1 // pred_check
      _
    $region43: #{chessnn_forward.1} parent=1 // pred_check_branch
      %86 = sbr.rel (0) target = $region45
    $region44: #{chessnn_forward.1} parent=1 // pred_region
      %88 = dma.done [#allocation9], 8192
    $region45: #{chessnn_forward.1} parent=1 // pred_fallthru
      _
    %v89 = vld [vmem:[#allocation3] sm:$0xff]
    %v90 = vld [vmem:[#allocation3 + $0x8] sm:$0xff]
    %v91 = vld [vmem:[#allocation3 + $0x10] sm:$0xff]
    %v92 = vld [vmem:[#allocation3 + $0x18] sm:$0xff]
    %v93 = vld [vmem:[#allocation3 + $0x20] sm:$0xff]
    %v94 = vld [vmem:[#allocation3 + $0x28] sm:$0xff]
    %v95 = vld [vmem:[#allocation3 + $0x30] sm:$0xff]
    %v96 = vld [vmem:[#allocation3 + $0x38] sm:$0xff]
    %v97 = vld [vmem:[#allocation3 + $0x40] sm:$0xff]
    %v98 = vld [vmem:[#allocation3 + $0x48] sm:$0xff]
    %v99 = vld [vmem:[#allocation3 + $0x50] sm:$0xff]
    %v100 = vld [vmem:[#allocation3 + $0x58] sm:$0xff]
    %v101 = vpack.c.bf16 %v95, %v89
    %v102 = vpack.c.bf16 %v96, %v90
    %v103 = vpack.c.bf16 %v97, %v91
    %v104 = vpack.c.bf16 %v98, %v92
    %v105 = vpack.c.bf16 %v99, %v93
    %v106 = vpack.c.bf16 %v100, %v94
    %v107 = vld [vmem:[#allocation5] sm:$0xff]
    %v108 = vld [vmem:[#allocation5 + $0x8] sm:$0xff]
    %v109 = vld [vmem:[#allocation5 + $0x10] sm:$0xff]
    %v110 = vld [vmem:[#allocation5 + $0x18] sm:$0xff]
    %v111 = vld [vmem:[#allocation5 + $0x20] sm:$0xff]
    %v112 = vld [vmem:[#allocation5 + $0x28] sm:$0xff]
    %v113 = vld [vmem:[#allocation5 + $0x30] sm:$0xff]
    %v114 = vld [vmem:[#allocation5 + $0x38] sm:$0xff]
    %v115 = vld [vmem:[#allocation5 + $0x40] sm:$0xff]
    %v116 = vld [vmem:[#allocation5 + $0x48] sm:$0xff]
    %v117 = vld [vmem:[#allocation5 + $0x50] sm:$0xff]
    %v118 = vld [vmem:[#allocation5 + $0x58] sm:$0xff]
    %v119 = vld [vmem:[#allocation5 + $0x60] sm:$0xff]
    %v120 = vld [vmem:[#allocation5 + $0x68] sm:$0xff]
    %v121 = vld [vmem:[#allocation5 + $0x70] sm:$0xff]
    %v122 = vld [vmem:[#allocation5 + $0x78] sm:$0xff]
    %v123 = vld [vmem:[#allocation5 + $0x80] sm:$0xff]
    %v124 = vld [vmem:[#allocation5 + $0x88] sm:$0xff]
    %v125 = vld [vmem:[#allocation5 + $0x90] sm:$0xff]
    %v126 = vld [vmem:[#allocation5 + $0x98] sm:$0xff]
    %v127 = vld [vmem:[#allocation5 + $0xa0] sm:$0xff]
    %v128 = vld [vmem:[#allocation5 + $0xa8] sm:$0xff]
    %v129 = vld [vmem:[#allocation5 + $0xb0] sm:$0xff]
    %v130 = vld [vmem:[#allocation5 + $0xb8] sm:$0xff]
    %v131 = vld [vmem:[#allocation5 + $0xc0] sm:$0xff]
    %v132 = vld [vmem:[#allocation5 + $0xc8] sm:$0xff]
    %v133 = vld [vmem:[#allocation5 + $0xd0] sm:$0xff]
    %v134 = vld [vmem:[#allocation5 + $0xd8] sm:$0xff]
    %v135 = vld [vmem:[#allocation5 + $0xe0] sm:$0xff]
    %v136 = vld [vmem:[#allocation5 + $0xe8] sm:$0xff]
    %v137 = vld [vmem:[#allocation5 + $0xf0] sm:$0xff]
    %v138 = vld [vmem:[#allocation5 + $0xf8] sm:$0xff]
    %v139 = vld [vmem:[#allocation5 + $0x100] sm:$0xff]
    %v140 = vld [vmem:[#allocation5 + $0x108] sm:$0xff]
    %v141 = vld [vmem:[#allocation5 + $0x110] sm:$0xff]
    %v142 = vld [vmem:[#allocation5 + $0x118] sm:$0xff]
    %v143 = vld [vmem:[#allocation5 + $0x120] sm:$0xff]
    %v144 = vld [vmem:[#allocation5 + $0x128] sm:$0xff]
    %v145 = vld [vmem:[#allocation5 + $0x130] sm:$0xff]
    %v146 = vld [vmem:[#allocation5 + $0x138] sm:$0xff]
    %v147 = vld [vmem:[#allocation5 + $0x140] sm:$0xff]
    %v148 = vld [vmem:[#allocation5 + $0x148] sm:$0xff]
    %v149 = vld [vmem:[#allocation5 + $0x150] sm:$0xff]
    %v150 = vld [vmem:[#allocation5 + $0x158] sm:$0xff]
    %v151 = vld [vmem:[#allocation5 + $0x160] sm:$0xff]
    %v152 = vld [vmem:[#allocation5 + $0x168] sm:$0xff]
    %v153 = vld [vmem:[#allocation5 + $0x170] sm:$0xff]
    %v154 = vld [vmem:[#allocation5 + $0x178] sm:$0xff]
    %v155 = vld [vmem:[#allocation5 + $0x180] sm:$0xff]
    %v156 = vld [vmem:[#allocation5 + $0x188] sm:$0xff]
    %v157 = vld [vmem:[#allocation5 + $0x190] sm:$0xff]
    %v158 = vld [vmem:[#allocation5 + $0x198] sm:$0xff]
    %v159 = vld [vmem:[#allocation5 + $0x1a0] sm:$0xff]
    %v160 = vld [vmem:[#allocation5 + $0x1a8] sm:$0xff]
    %v161 = vld [vmem:[#allocation5 + $0x1b0] sm:$0xff]
    %v162 = vld [vmem:[#allocation5 + $0x1b8] sm:$0xff]
    %v163 = vld [vmem:[#allocation5 + $0x1c0] sm:$0xff]
    %v164 = vld [vmem:[#allocation5 + $0x1c8] sm:$0xff]
    %v165 = vld [vmem:[#allocation5 + $0x1d0] sm:$0xff]
    %v166 = vld [vmem:[#allocation5 + $0x1d8] sm:$0xff]
    %v167 = vld [vmem:[#allocation5 + $0x1e0] sm:$0xff]
    %v168 = vld [vmem:[#allocation5 + $0x1e8] sm:$0xff]
    %v169 = vld [vmem:[#allocation5 + $0x1f0] sm:$0xff]
    %v170 = vld [vmem:[#allocation5 + $0x1f8] sm:$0xff]
    %v171 = vld [vmem:[#allocation5 + $0x200] sm:$0xff]
    %v172 = vld [vmem:[#allocation5 + $0x208] sm:$0xff]
    %v173 = vld [vmem:[#allocation5 + $0x210] sm:$0xff]
    %v174 = vld [vmem:[#allocation5 + $0x218] sm:$0xff]
    %v175 = vld [vmem:[#allocation5 + $0x220] sm:$0xff]
    %v176 = vld [vmem:[#allocation5 + $0x228] sm:$0xff]
    %v177 = vld [vmem:[#allocation5 + $0x230] sm:$0xff]
    %v178 = vld [vmem:[#allocation5 + $0x238] sm:$0xff]
    %v179 = vld [vmem:[#allocation5 + $0x240] sm:$0xff]
    %v180 = vld [vmem:[#allocation5 + $0x248] sm:$0xff]
    %v181 = vld [vmem:[#allocation5 + $0x250] sm:$0xff]
    %v182 = vld [vmem:[#allocation5 + $0x258] sm:$0xff]
    %v183 = vld [vmem:[#allocation5 + $0x260] sm:$0xff]
    %v184 = vld [vmem:[#allocation5 + $0x268] sm:$0xff]
    %v185 = vld [vmem:[#allocation5 + $0x270] sm:$0xff]
    %v186 = vld [vmem:[#allocation5 + $0x278] sm:$0xff]
    %v187 = vld [vmem:[#allocation5 + $0x280] sm:$0xff]
    %v188 = vld [vmem:[#allocation5 + $0x288] sm:$0xff]
    %v189 = vld [vmem:[#allocation5 + $0x290] sm:$0xff]
    %v190 = vld [vmem:[#allocation5 + $0x298] sm:$0xff]
    %v191 = vld [vmem:[#allocation5 + $0x2a0] sm:$0xff]
    %v192 = vld [vmem:[#allocation5 + $0x2a8] sm:$0xff]
    %v193 = vld [vmem:[#allocation5 + $0x2b0] sm:$0xff]
    %v194 = vld [vmem:[#allocation5 + $0x2b8] sm:$0xff]
    %v195 = vld [vmem:[#allocation5 + $0x2c0] sm:$0xff]
    %v196 = vld [vmem:[#allocation5 + $0x2c8] sm:$0xff]
    %v197 = vld [vmem:[#allocation5 + $0x2d0] sm:$0xff]
    %v198 = vld [vmem:[#allocation5 + $0x2d8] sm:$0xff]
    %v199 = vld [vmem:[#allocation5 + $0x2e0] sm:$0xff]
    %v200 = vld [vmem:[#allocation5 + $0x2e8] sm:$0xff]
    %v201 = vld [vmem:[#allocation5 + $0x2f0] sm:$0xff]
    %v202 = vld [vmem:[#allocation5 + $0x2f8] sm:$0xff]
    %v203 = vld [vmem:[#allocation5 + $0x300] sm:$0xff]
    %v204 = vld [vmem:[#allocation5 + $0x308] sm:$0xff]
    %v205 = vld [vmem:[#allocation5 + $0x310] sm:$0xff]
    %v206 = vld [vmem:[#allocation5 + $0x318] sm:$0xff]
    %v207 = vld [vmem:[#allocation5 + $0x320] sm:$0xff]
    %v208 = vld [vmem:[#allocation5 + $0x328] sm:$0xff]
    %v209 = vld [vmem:[#allocation5 + $0x330] sm:$0xff]
    %v210 = vld [vmem:[#allocation5 + $0x338] sm:$0xff]
    %v211 = vld [vmem:[#allocation5 + $0x340] sm:$0xff]
    %v212 = vld [vmem:[#allocation5 + $0x348] sm:$0xff]
    %v213 = vld [vmem:[#allocation5 + $0x350] sm:$0xff]
    %v214 = vld [vmem:[#allocation5 + $0x358] sm:$0xff]
    %v215 = vld [vmem:[#allocation5 + $0x360] sm:$0xff]
    %v216 = vld [vmem:[#allocation5 + $0x368] sm:$0xff]
    %v217 = vld [vmem:[#allocation5 + $0x370] sm:$0xff]
    %v218 = vld [vmem:[#allocation5 + $0x378] sm:$0xff]
    %v219 = vld [vmem:[#allocation5 + $0x380] sm:$0xff]
    %v220 = vld [vmem:[#allocation5 + $0x388] sm:$0xff]
    %v221 = vld [vmem:[#allocation5 + $0x390] sm:$0xff]
    %v222 = vld [vmem:[#allocation5 + $0x398] sm:$0xff]
    %v223 = vld [vmem:[#allocation5 + $0x3a0] sm:$0xff]
    %v224 = vld [vmem:[#allocation5 + $0x3a8] sm:$0xff]
    %v225 = vld [vmem:[#allocation5 + $0x3b0] sm:$0xff]
    %v226 = vld [vmem:[#allocation5 + $0x3b8] sm:$0xff]
    %v227 = vld [vmem:[#allocation5 + $0x3c0] sm:$0xff]
    %v228 = vld [vmem:[#allocation5 + $0x3c8] sm:$0xff]
    %v229 = vld [vmem:[#allocation5 + $0x3d0] sm:$0xff]
    %v230 = vld [vmem:[#allocation5 + $0x3d8] sm:$0xff]
    %v231 = vld [vmem:[#allocation5 + $0x3e0] sm:$0xff]
    %v232 = vld [vmem:[#allocation5 + $0x3e8] sm:$0xff]
    %v233 = vld [vmem:[#allocation5 + $0x3f0] sm:$0xff]
    %v234 = vld [vmem:[#allocation5 + $0x3f8] sm:$0xff]
    %v235 = vld [vmem:[#allocation5 + $0x400] sm:$0xff]
    %v236 = vld [vmem:[#allocation5 + $0x408] sm:$0xff]
    %v237 = vld [vmem:[#allocation5 + $0x410] sm:$0xff]
    %v238 = vld [vmem:[#allocation5 + $0x418] sm:$0xff]
    %v239 = vld [vmem:[#allocation5 + $0x420] sm:$0xff]
    %v240 = vld [vmem:[#allocation5 + $0x428] sm:$0xff]
    %v241 = vld [vmem:[#allocation5 + $0x430] sm:$0xff]
    %v242 = vld [vmem:[#allocation5 + $0x438] sm:$0xff]
    %v243 = vld [vmem:[#allocation5 + $0x440] sm:$0xff]
    %v244 = vld [vmem:[#allocation5 + $0x448] sm:$0xff]
    %v245 = vld [vmem:[#allocation5 + $0x450] sm:$0xff]
    %v246 = vld [vmem:[#allocation5 + $0x458] sm:$0xff]
    %v247 = vld [vmem:[#allocation5 + $0x460] sm:$0xff]
    %v248 = vld [vmem:[#allocation5 + $0x468] sm:$0xff]
    %v249 = vld [vmem:[#allocation5 + $0x470] sm:$0xff]
    %v250 = vld [vmem:[#allocation5 + $0x478] sm:$0xff]
    %v251 = vld [vmem:[#allocation5 + $0x480] sm:$0xff]
    %v252 = vld [vmem:[#allocation5 + $0x488] sm:$0xff]
    %v253 = vld [vmem:[#allocation5 + $0x490] sm:$0xff]
    %v254 = vld [vmem:[#allocation5 + $0x498] sm:$0xff]
    %v255 = vld [vmem:[#allocation5 + $0x4a0] sm:$0xff]
    %v256 = vld [vmem:[#allocation5 + $0x4a8] sm:$0xff]
    %v257 = vld [vmem:[#allocation5 + $0x4b0] sm:$0xff]
    %v258 = vld [vmem:[#allocation5 + $0x4b8] sm:$0xff]
    %v259 = vld [vmem:[#allocation5 + $0x4c0] sm:$0xff]
    %v260 = vld [vmem:[#allocation5 + $0x4c8] sm:$0xff]
    %v261 = vld [vmem:[#allocation5 + $0x4d0] sm:$0xff]
    %v262 = vld [vmem:[#allocation5 + $0x4d8] sm:$0xff]
    %v263 = vld [vmem:[#allocation5 + $0x4e0] sm:$0xff]
    %v264 = vld [vmem:[#allocation5 + $0x4e8] sm:$0xff]
    %v265 = vld [vmem:[#allocation5 + $0x4f0] sm:$0xff]
    %v266 = vld [vmem:[#allocation5 + $0x4f8] sm:$0xff]
    %v267 = vld [vmem:[#allocation5 + $0x500] sm:$0xff]
    %v268 = vld [vmem:[#allocation5 + $0x508] sm:$0xff]
    %v269 = vld [vmem:[#allocation5 + $0x510] sm:$0xff]
    %v270 = vld [vmem:[#allocation5 + $0x518] sm:$0xff]
    %v271 = vld [vmem:[#allocation5 + $0x520] sm:$0xff]
    %v272 = vld [vmem:[#allocation5 + $0x528] sm:$0xff]
    %v273 = vld [vmem:[#allocation5 + $0x530] sm:$0xff]
    %v274 = vld [vmem:[#allocation5 + $0x538] sm:$0xff]
    %v275 = vld [vmem:[#allocation5 + $0x540] sm:$0xff]
    %v276 = vld [vmem:[#allocation5 + $0x548] sm:$0xff]
    %v277 = vld [vmem:[#allocation5 + $0x550] sm:$0xff]
    %v278 = vld [vmem:[#allocation5 + $0x558] sm:$0xff]
    %v279 = vld [vmem:[#allocation5 + $0x560] sm:$0xff]
    %v280 = vld [vmem:[#allocation5 + $0x568] sm:$0xff]
    %v281 = vld [vmem:[#allocation5 + $0x570] sm:$0xff]
    %v282 = vld [vmem:[#allocation5 + $0x578] sm:$0xff]
    %v283 = vld [vmem:[#allocation5 + $0x580] sm:$0xff]
    %v284 = vld [vmem:[#allocation5 + $0x588] sm:$0xff]
    %v285 = vld [vmem:[#allocation5 + $0x590] sm:$0xff]
    %v286 = vld [vmem:[#allocation5 + $0x598] sm:$0xff]
    %v287 = vld [vmem:[#allocation5 + $0x5a0] sm:$0xff]
    %v288 = vld [vmem:[#allocation5 + $0x5a8] sm:$0xff]
    %v289 = vld [vmem:[#allocation5 + $0x5b0] sm:$0xff]
    %v290 = vld [vmem:[#allocation5 + $0x5b8] sm:$0xff]
    %v291 = vld [vmem:[#allocation5 + $0x5c0] sm:$0xff]
    %v292 = vld [vmem:[#allocation5 + $0x5c8] sm:$0xff]
    %v293 = vld [vmem:[#allocation5 + $0x5d0] sm:$0xff]
    %v294 = vld [vmem:[#allocation5 + $0x5d8] sm:$0xff]
    %v295 = vld [vmem:[#allocation5 + $0x5e0] sm:$0xff]
    %v296 = vld [vmem:[#allocation5 + $0x5e8] sm:$0xff]
    %v297 = vld [vmem:[#allocation5 + $0x5f0] sm:$0xff]
    %v298 = vld [vmem:[#allocation5 + $0x5f8] sm:$0xff]
    %v299 = vld [vmem:[#allocation7] sm:$0xf]
    %v301 = vperm.slane %v299, 0
    %v302 = vperm.slane %v299, 1
    %v303 = vperm.slane %v299, 2
    %v304 = vperm.slane %v299, 3
    %v501 = vunpack.c.l.b16 %v107
    %v502 = vunpack.c.h.b16 %v107
    %v503 = vunpack.c.l.b16 %v108
    %v504 = vunpack.c.h.b16 %v108
    %v505 = vunpack.c.l.b16 %v109
    %v506 = vunpack.c.h.b16 %v109
    %v507 = vunpack.c.l.b16 %v110
    %v508 = vunpack.c.h.b16 %v110
    %v509 = vunpack.c.l.b16 %v111
    %v510 = vunpack.c.h.b16 %v111
    %v511 = vunpack.c.l.b16 %v112
    %v512 = vunpack.c.h.b16 %v112
    %v513 = vunpack.c.l.b16 %v113
    %v514 = vunpack.c.h.b16 %v113
    %v515 = vunpack.c.l.b16 %v114
    %v516 = vunpack.c.h.b16 %v114
    %v517 = vunpack.c.l.b16 %v115
    %v518 = vunpack.c.h.b16 %v115
    %v519 = vunpack.c.l.b16 %v116
    %v520 = vunpack.c.h.b16 %v116
    %v521 = vunpack.c.l.b16 %v117
    %v522 = vunpack.c.h.b16 %v117
    %v523 = vunpack.c.l.b16 %v118
    %v524 = vunpack.c.h.b16 %v118
    %v525 = vunpack.c.l.b16 %v119
    %v526 = vunpack.c.h.b16 %v119
    %v527 = vunpack.c.l.b16 %v120
    %v528 = vunpack.c.h.b16 %v120
    %v529 = vunpack.c.l.b16 %v121
    %v530 = vunpack.c.h.b16 %v121
    %v531 = vunpack.c.l.b16 %v122
    %v532 = vunpack.c.h.b16 %v122
    %v533 = vunpack.c.l.b16 %v123
    %v534 = vunpack.c.h.b16 %v123
    %v535 = vunpack.c.l.b16 %v124
    %v536 = vunpack.c.h.b16 %v124
    %v537 = vunpack.c.l.b16 %v125
    %v538 = vunpack.c.h.b16 %v125
    %v539 = vunpack.c.l.b16 %v126
    %v540 = vunpack.c.h.b16 %v126
    %v541 = vunpack.c.l.b16 %v127
    %v542 = vunpack.c.h.b16 %v127
    %v543 = vunpack.c.l.b16 %v128
    %v544 = vunpack.c.h.b16 %v128
    %v545 = vunpack.c.l.b16 %v129
    %v546 = vunpack.c.h.b16 %v129
    %v547 = vunpack.c.l.b16 %v130
    %v548 = vunpack.c.h.b16 %v130
    %v549 = vunpack.c.l.b16 %v131
    %v550 = vunpack.c.h.b16 %v131
    %v551 = vunpack.c.l.b16 %v132
    %v552 = vunpack.c.h.b16 %v132
    %v553 = vunpack.c.l.b16 %v133
    %v554 = vunpack.c.h.b16 %v133
    %v555 = vunpack.c.l.b16 %v134
    %v556 = vunpack.c.h.b16 %v134
    %v557 = vunpack.c.l.b16 %v135
    %v558 = vunpack.c.h.b16 %v135
    %v559 = vunpack.c.l.b16 %v136
    %v560 = vunpack.c.h.b16 %v136
    %v561 = vunpack.c.l.b16 %v137
    %v562 = vunpack.c.h.b16 %v137
    %v563 = vunpack.c.l.b16 %v138
    %v564 = vunpack.c.h.b16 %v138
    %v565 = vunpack.c.l.b16 %v139
    %v566 = vunpack.c.h.b16 %v139
    %v567 = vunpack.c.l.b16 %v140
    %v568 = vunpack.c.h.b16 %v140
    %v569 = vunpack.c.l.b16 %v141
    %v570 = vunpack.c.h.b16 %v141
    %v571 = vunpack.c.l.b16 %v142
    %v572 = vunpack.c.h.b16 %v142
    %v573 = vunpack.c.l.b16 %v143
    %v574 = vunpack.c.h.b16 %v143
    %v575 = vunpack.c.l.b16 %v144
    %v576 = vunpack.c.h.b16 %v144
    %v577 = vunpack.c.l.b16 %v145
    %v578 = vunpack.c.h.b16 %v145
    %v579 = vunpack.c.l.b16 %v146
    %v580 = vunpack.c.h.b16 %v146
    %v581 = vunpack.c.l.b16 %v147
    %v582 = vunpack.c.h.b16 %v147
    %v583 = vunpack.c.l.b16 %v148
    %v584 = vunpack.c.h.b16 %v148
    %v585 = vunpack.c.l.b16 %v149
    %v586 = vunpack.c.h.b16 %v149
    %v587 = vunpack.c.l.b16 %v150
    %v588 = vunpack.c.h.b16 %v150
    %v589 = vunpack.c.l.b16 %v151
    %v590 = vunpack.c.h.b16 %v151
    %v591 = vunpack.c.l.b16 %v152
    %v592 = vunpack.c.h.b16 %v152
    %v593 = vunpack.c.l.b16 %v153
    %v594 = vunpack.c.h.b16 %v153
    %v595 = vunpack.c.l.b16 %v154
    %v596 = vunpack.c.h.b16 %v154
    %v597 = vunpack.c.l.b16 %v155
    %v598 = vunpack.c.h.b16 %v155
    %v599 = vunpack.c.l.b16 %v156
    %v600 = vunpack.c.h.b16 %v156
    %v601 = vunpack.c.l.b16 %v157
    %v602 = vunpack.c.h.b16 %v157
    %v603 = vunpack.c.l.b16 %v158
    %v604 = vunpack.c.h.b16 %v158
    %v605 = vunpack.c.l.b16 %v159
    %v606 = vunpack.c.h.b16 %v159
    %v607 = vunpack.c.l.b16 %v160
    %v608 = vunpack.c.h.b16 %v160
    %v609 = vunpack.c.l.b16 %v161
    %v610 = vunpack.c.h.b16 %v161
    %v611 = vunpack.c.l.b16 %v162
    %v612 = vunpack.c.h.b16 %v162
    %v613 = vunpack.c.l.b16 %v163
    %v614 = vunpack.c.h.b16 %v163
    %v615 = vunpack.c.l.b16 %v164
    %v616 = vunpack.c.h.b16 %v164
    %v617 = vunpack.c.l.b16 %v165
    %v618 = vunpack.c.h.b16 %v165
    %v619 = vunpack.c.l.b16 %v166
    %v620 = vunpack.c.h.b16 %v166
    %v621 = vunpack.c.l.b16 %v167
    %v622 = vunpack.c.h.b16 %v167
    %v623 = vunpack.c.l.b16 %v168
    %v624 = vunpack.c.h.b16 %v168
    %v625 = vunpack.c.l.b16 %v169
    %v626 = vunpack.c.h.b16 %v169
    %v627 = vunpack.c.l.b16 %v170
    %v628 = vunpack.c.h.b16 %v170
    %v629 = vunpack.c.l.b16 %v171
    %v630 = vunpack.c.h.b16 %v171
    %v631 = vunpack.c.l.b16 %v172
    %v632 = vunpack.c.h.b16 %v172
    %v633 = vunpack.c.l.b16 %v173
    %v634 = vunpack.c.h.b16 %v173
    %v635 = vunpack.c.l.b16 %v174
    %v636 = vunpack.c.h.b16 %v174
    %v637 = vunpack.c.l.b16 %v175
    %v638 = vunpack.c.h.b16 %v175
    %v639 = vunpack.c.l.b16 %v176
    %v640 = vunpack.c.h.b16 %v176
    %v641 = vunpack.c.l.b16 %v177
    %v642 = vunpack.c.h.b16 %v177
    %v643 = vunpack.c.l.b16 %v178
    %v644 = vunpack.c.h.b16 %v178
    %v645 = vunpack.c.l.b16 %v179
    %v646 = vunpack.c.h.b16 %v179
    %v647 = vunpack.c.l.b16 %v180
    %v648 = vunpack.c.h.b16 %v180
    %v649 = vunpack.c.l.b16 %v181
    %v650 = vunpack.c.h.b16 %v181
    %v651 = vunpack.c.l.b16 %v182
    %v652 = vunpack.c.h.b16 %v182
    %v653 = vunpack.c.l.b16 %v183
    %v654 = vunpack.c.h.b16 %v183
    %v655 = vunpack.c.l.b16 %v184
    %v656 = vunpack.c.h.b16 %v184
    %v657 = vunpack.c.l.b16 %v185
    %v658 = vunpack.c.h.b16 %v185
    %v659 = vunpack.c.l.b16 %v186
    %v660 = vunpack.c.h.b16 %v186
    %v661 = vunpack.c.l.b16 %v187
    %v662 = vunpack.c.h.b16 %v187
    %v663 = vunpack.c.l.b16 %v188
    %v664 = vunpack.c.h.b16 %v188
    %v665 = vunpack.c.l.b16 %v189
    %v666 = vunpack.c.h.b16 %v189
    %v667 = vunpack.c.l.b16 %v190
    %v668 = vunpack.c.h.b16 %v190
    %v669 = vunpack.c.l.b16 %v191
    %v670 = vunpack.c.h.b16 %v191
    %v671 = vunpack.c.l.b16 %v192
    %v672 = vunpack.c.h.b16 %v192
    %v673 = vunpack.c.l.b16 %v193
    %v674 = vunpack.c.h.b16 %v193
    %v675 = vunpack.c.l.b16 %v194
    %v676 = vunpack.c.h.b16 %v194
    %v677 = vunpack.c.l.b16 %v195
    %v678 = vunpack.c.h.b16 %v195
    %v679 = vunpack.c.l.b16 %v196
    %v680 = vunpack.c.h.b16 %v196
    %v681 = vunpack.c.l.b16 %v197
    %v682 = vunpack.c.h.b16 %v197
    %v683 = vunpack.c.l.b16 %v198
    %v684 = vunpack.c.h.b16 %v198
    %v685 = vunpack.c.l.b16 %v199
    %v686 = vunpack.c.h.b16 %v199
    %v687 = vunpack.c.l.b16 %v200
    %v688 = vunpack.c.h.b16 %v200
    %v689 = vunpack.c.l.b16 %v201
    %v690 = vunpack.c.h.b16 %v201
    %v691 = vunpack.c.l.b16 %v202
    %v692 = vunpack.c.h.b16 %v202
    %v693 = vunpack.c.l.b16 %v203
    %v694 = vunpack.c.h.b16 %v203
    %v695 = vunpack.c.l.b16 %v204
    %v696 = vunpack.c.h.b16 %v204
    %v697 = vunpack.c.l.b16 %v205
    %v698 = vunpack.c.h.b16 %v205
    %v699 = vunpack.c.l.b16 %v206
    %v700 = vunpack.c.h.b16 %v206
    %v701 = vunpack.c.l.b16 %v207
    %v702 = vunpack.c.h.b16 %v207
    %v703 = vunpack.c.l.b16 %v208
    %v704 = vunpack.c.h.b16 %v208
    %v705 = vunpack.c.l.b16 %v209
    %v706 = vunpack.c.h.b16 %v209
    %v707 = vunpack.c.l.b16 %v210
    %v708 = vunpack.c.h.b16 %v210
    %v709 = vunpack.c.l.b16 %v211
    %v710 = vunpack.c.h.b16 %v211
    %v711 = vunpack.c.l.b16 %v212
    %v712 = vunpack.c.h.b16 %v212
    %v713 = vunpack.c.l.b16 %v213
    %v714 = vunpack.c.h.b16 %v213
    %v715 = vunpack.c.l.b16 %v214
    %v716 = vunpack.c.h.b16 %v214
    %v717 = vunpack.c.l.b16 %v215
    %v718 = vunpack.c.h.b16 %v215
    %v719 = vunpack.c.l.b16 %v216
    %v720 = vunpack.c.h.b16 %v216
    %v721 = vunpack.c.l.b16 %v217
    %v722 = vunpack.c.h.b16 %v217
    %v723 = vunpack.c.l.b16 %v218
    %v724 = vunpack.c.h.b16 %v218
    %v725 = vunpack.c.l.b16 %v219
    %v726 = vunpack.c.h.b16 %v219
    %v727 = vunpack.c.l.b16 %v220
    %v728 = vunpack.c.h.b16 %v220
    %v729 = vunpack.c.l.b16 %v221
    %v730 = vunpack.c.h.b16 %v221
    %v731 = vunpack.c.l.b16 %v222
    %v732 = vunpack.c.h.b16 %v222
    %v733 = vunpack.c.l.b16 %v223
    %v734 = vunpack.c.h.b16 %v223
    %v735 = vunpack.c.l.b16 %v224
    %v736 = vunpack.c.h.b16 %v224
    %v737 = vunpack.c.l.b16 %v225
    %v738 = vunpack.c.h.b16 %v225
    %v739 = vunpack.c.l.b16 %v226
    %v740 = vunpack.c.h.b16 %v226
    %v741 = vunpack.c.l.b16 %v227
    %v742 = vunpack.c.h.b16 %v227
    %v743 = vunpack.c.l.b16 %v228
    %v744 = vunpack.c.h.b16 %v228
    %v745 = vunpack.c.l.b16 %v229
    %v746 = vunpack.c.h.b16 %v229
    %v747 = vunpack.c.l.b16 %v230
    %v748 = vunpack.c.h.b16 %v230
    %v749 = vunpack.c.l.b16 %v231
    %v750 = vunpack.c.h.b16 %v231
    %v751 = vunpack.c.l.b16 %v232
    %v752 = vunpack.c.h.b16 %v232
    %v753 = vunpack.c.l.b16 %v233
    %v754 = vunpack.c.h.b16 %v233
    %v755 = vunpack.c.l.b16 %v234
    %v756 = vunpack.c.h.b16 %v234
    %v757 = vunpack.c.l.b16 %v235
    %v758 = vunpack.c.h.b16 %v235
    %v759 = vunpack.c.l.b16 %v236
    %v760 = vunpack.c.h.b16 %v236
    %v761 = vunpack.c.l.b16 %v237
    %v762 = vunpack.c.h.b16 %v237
    %v763 = vunpack.c.l.b16 %v238
    %v764 = vunpack.c.h.b16 %v238
    %v765 = vunpack.c.l.b16 %v239
    %v766 = vunpack.c.h.b16 %v239
    %v767 = vunpack.c.l.b16 %v240
    %v768 = vunpack.c.h.b16 %v240
    %v769 = vunpack.c.l.b16 %v241
    %v770 = vunpack.c.h.b16 %v241
    %v771 = vunpack.c.l.b16 %v242
    %v772 = vunpack.c.h.b16 %v242
    %v773 = vunpack.c.l.b16 %v243
    %v774 = vunpack.c.h.b16 %v243
    %v775 = vunpack.c.l.b16 %v244
    %v776 = vunpack.c.h.b16 %v244
    %v777 = vunpack.c.l.b16 %v245
    %v778 = vunpack.c.h.b16 %v245
    %v779 = vunpack.c.l.b16 %v246
    %v780 = vunpack.c.h.b16 %v246
    %v781 = vunpack.c.l.b16 %v247
    %v782 = vunpack.c.h.b16 %v247
    %v783 = vunpack.c.l.b16 %v248
    %v784 = vunpack.c.h.b16 %v248
    %v785 = vunpack.c.l.b16 %v249
    %v786 = vunpack.c.h.b16 %v249
    %v787 = vunpack.c.l.b16 %v250
    %v788 = vunpack.c.h.b16 %v250
    %v789 = vunpack.c.l.b16 %v251
    %v790 = vunpack.c.h.b16 %v251
    %v791 = vunpack.c.l.b16 %v252
    %v792 = vunpack.c.h.b16 %v252
    %v793 = vunpack.c.l.b16 %v253
    %v794 = vunpack.c.h.b16 %v253
    %v795 = vunpack.c.l.b16 %v254
    %v796 = vunpack.c.h.b16 %v254
    %v797 = vunpack.c.l.b16 %v255
    %v798 = vunpack.c.h.b16 %v255
    %v799 = vunpack.c.l.b16 %v256
    %v800 = vunpack.c.h.b16 %v256
    %v801 = vunpack.c.l.b16 %v257
    %v802 = vunpack.c.h.b16 %v257
    %v803 = vunpack.c.l.b16 %v258
    %v804 = vunpack.c.h.b16 %v258
    %v805 = vunpack.c.l.b16 %v259
    %v806 = vunpack.c.h.b16 %v259
    %v807 = vunpack.c.l.b16 %v260
    %v808 = vunpack.c.h.b16 %v260
    %v809 = vunpack.c.l.b16 %v261
    %v810 = vunpack.c.h.b16 %v261
    %v811 = vunpack.c.l.b16 %v262
    %v812 = vunpack.c.h.b16 %v262
    %v813 = vunpack.c.l.b16 %v263
    %v814 = vunpack.c.h.b16 %v263
    %v815 = vunpack.c.l.b16 %v264
    %v816 = vunpack.c.h.b16 %v264
    %v817 = vunpack.c.l.b16 %v265
    %v818 = vunpack.c.h.b16 %v265
    %v819 = vunpack.c.l.b16 %v266
    %v820 = vunpack.c.h.b16 %v266
    %v821 = vunpack.c.l.b16 %v267
    %v822 = vunpack.c.h.b16 %v267
    %v823 = vunpack.c.l.b16 %v268
    %v824 = vunpack.c.h.b16 %v268
    %v825 = vunpack.c.l.b16 %v269
    %v826 = vunpack.c.h.b16 %v269
    %v827 = vunpack.c.l.b16 %v270
    %v828 = vunpack.c.h.b16 %v270
    %v829 = vunpack.c.l.b16 %v271
    %v830 = vunpack.c.h.b16 %v271
    %v831 = vunpack.c.l.b16 %v272
    %v832 = vunpack.c.h.b16 %v272
    %v833 = vunpack.c.l.b16 %v273
    %v834 = vunpack.c.h.b16 %v273
    %v835 = vunpack.c.l.b16 %v274
    %v836 = vunpack.c.h.b16 %v274
    %v837 = vunpack.c.l.b16 %v275
    %v838 = vunpack.c.h.b16 %v275
    %v839 = vunpack.c.l.b16 %v276
    %v840 = vunpack.c.h.b16 %v276
    %v841 = vunpack.c.l.b16 %v277
    %v842 = vunpack.c.h.b16 %v277
    %v843 = vunpack.c.l.b16 %v278
    %v844 = vunpack.c.h.b16 %v278
    %v845 = vunpack.c.l.b16 %v279
    %v846 = vunpack.c.h.b16 %v279
    %v847 = vunpack.c.l.b16 %v280
    %v848 = vunpack.c.h.b16 %v280
    %v849 = vunpack.c.l.b16 %v281
    %v850 = vunpack.c.h.b16 %v281
    %v851 = vunpack.c.l.b16 %v282
    %v852 = vunpack.c.h.b16 %v282
    %v853 = vunpack.c.l.b16 %v283
    %v854 = vunpack.c.h.b16 %v283
    %v855 = vunpack.c.l.b16 %v284
    %v856 = vunpack.c.h.b16 %v284
    %v857 = vunpack.c.l.b16 %v285
    %v858 = vunpack.c.h.b16 %v285
    %v859 = vunpack.c.l.b16 %v286
    %v860 = vunpack.c.h.b16 %v286
    %v861 = vunpack.c.l.b16 %v287
    %v862 = vunpack.c.h.b16 %v287
    %v863 = vunpack.c.l.b16 %v288
    %v864 = vunpack.c.h.b16 %v288
    %v865 = vunpack.c.l.b16 %v289
    %v866 = vunpack.c.h.b16 %v289
    %v867 = vunpack.c.l.b16 %v290
    %v868 = vunpack.c.h.b16 %v290
    %v869 = vunpack.c.l.b16 %v291
    %v870 = vunpack.c.h.b16 %v291
    %v871 = vunpack.c.l.b16 %v292
    %v872 = vunpack.c.h.b16 %v292
    %v873 = vunpack.c.l.b16 %v293
    %v874 = vunpack.c.h.b16 %v293
    %v875 = vunpack.c.l.b16 %v294
    %v876 = vunpack.c.h.b16 %v294
    %v877 = vunpack.c.l.b16 %v295
    %v878 = vunpack.c.h.b16 %v295
    %v879 = vunpack.c.l.b16 %v296
    %v880 = vunpack.c.h.b16 %v296
    %v881 = vunpack.c.l.b16 %v297
    %v882 = vunpack.c.h.b16 %v297
    %v883 = vunpack.c.l.b16 %v298
    %v884 = vunpack.c.h.b16 %v298
    %v885 = vpack.c.b16 %v505, %v501
    %v886 = vpack.c.b16 %v506, %v502
    %v887 = vpack.c.b16 %v507, %v503
    %v888 = vpack.c.b16 %v508, %v504
    %v889 = vpack.c.b16 %v513, %v509
    %v890 = vpack.c.b16 %v514, %v510
    %v891 = vpack.c.b16 %v515, %v511
    %v892 = vpack.c.b16 %v516, %v512
    %v893 = vpack.c.b16 %v521, %v517
    %v894 = vpack.c.b16 %v522, %v518
    %v895 = vpack.c.b16 %v523, %v519
    %v896 = vpack.c.b16 %v524, %v520
    %v897 = vpack.c.b16 %v529, %v525
    %v898 = vpack.c.b16 %v530, %v526
    %v899 = vpack.c.b16 %v531, %v527
    %v900 = vpack.c.b16 %v532, %v528
    %v901 = vpack.c.b16 %v537, %v533
    %v902 = vpack.c.b16 %v538, %v534
    %v903 = vpack.c.b16 %v539, %v535
    %v904 = vpack.c.b16 %v540, %v536
    %v905 = vpack.c.b16 %v545, %v541
    %v906 = vpack.c.b16 %v546, %v542
    %v907 = vpack.c.b16 %v547, %v543
    %v908 = vpack.c.b16 %v548, %v544
    %v909 = vpack.c.b16 %v553, %v549
    %v910 = vpack.c.b16 %v554, %v550
    %v911 = vpack.c.b16 %v555, %v551
    %v912 = vpack.c.b16 %v556, %v552
    %v913 = vpack.c.b16 %v561, %v557
    %v914 = vpack.c.b16 %v562, %v558
    %v915 = vpack.c.b16 %v563, %v559
    %v916 = vpack.c.b16 %v564, %v560
    %v917 = vpack.c.b16 %v569, %v565
    %v918 = vpack.c.b16 %v570, %v566
    %v919 = vpack.c.b16 %v571, %v567
    %v920 = vpack.c.b16 %v572, %v568
    %v921 = vpack.c.b16 %v577, %v573
    %v922 = vpack.c.b16 %v578, %v574
    %v923 = vpack.c.b16 %v579, %v575
    %v924 = vpack.c.b16 %v580, %v576
    %v925 = vpack.c.b16 %v585, %v581
    %v926 = vpack.c.b16 %v586, %v582
    %v927 = vpack.c.b16 %v587, %v583
    %v928 = vpack.c.b16 %v588, %v584
    %v929 = vpack.c.b16 %v593, %v589
    %v930 = vpack.c.b16 %v594, %v590
    %v931 = vpack.c.b16 %v595, %v591
    %v932 = vpack.c.b16 %v596, %v592
    %v933 = vpack.c.b16 %v601, %v597
    %v934 = vpack.c.b16 %v602, %v598
    %v935 = vpack.c.b16 %v603, %v599
    %v936 = vpack.c.b16 %v604, %v600
    %v937 = vpack.c.b16 %v609, %v605
    %v938 = vpack.c.b16 %v610, %v606
    %v939 = vpack.c.b16 %v611, %v607
    %v940 = vpack.c.b16 %v612, %v608
    %v941 = vpack.c.b16 %v617, %v613
    %v942 = vpack.c.b16 %v618, %v614
    %v943 = vpack.c.b16 %v619, %v615
    %v944 = vpack.c.b16 %v620, %v616
    %v945 = vpack.c.b16 %v625, %v621
    %v946 = vpack.c.b16 %v626, %v622
    %v947 = vpack.c.b16 %v627, %v623
    %v948 = vpack.c.b16 %v628, %v624
    %v949 = vpack.c.b16 %v633, %v629
    %v950 = vpack.c.b16 %v634, %v630
    %v951 = vpack.c.b16 %v635, %v631
    %v952 = vpack.c.b16 %v636, %v632
    %v953 = vpack.c.b16 %v641, %v637
    %v954 = vpack.c.b16 %v642, %v638
    %v955 = vpack.c.b16 %v643, %v639
    %v956 = vpack.c.b16 %v644, %v640
    %v957 = vpack.c.b16 %v649, %v645
    %v958 = vpack.c.b16 %v650, %v646
    %v959 = vpack.c.b16 %v651, %v647
    %v960 = vpack.c.b16 %v652, %v648
    %v961 = vpack.c.b16 %v657, %v653
    %v962 = vpack.c.b16 %v658, %v654
    %v963 = vpack.c.b16 %v659, %v655
    %v964 = vpack.c.b16 %v660, %v656
    %v965 = vpack.c.b16 %v665, %v661
    %v966 = vpack.c.b16 %v666, %v662
    %v967 = vpack.c.b16 %v667, %v663
    %v968 = vpack.c.b16 %v668, %v664
    %v969 = vpack.c.b16 %v673, %v669
    %v970 = vpack.c.b16 %v674, %v670
    %v971 = vpack.c.b16 %v675, %v671
    %v972 = vpack.c.b16 %v676, %v672
    %v973 = vpack.c.b16 %v681, %v677
    %v974 = vpack.c.b16 %v682, %v678
    %v975 = vpack.c.b16 %v683, %v679
    %v976 = vpack.c.b16 %v684, %v680
    %v977 = vpack.c.b16 %v689, %v685
    %v978 = vpack.c.b16 %v690, %v686
    %v979 = vpack.c.b16 %v691, %v687
    %v980 = vpack.c.b16 %v692, %v688
    %v981 = vpack.c.b16 %v697, %v693
    %v982 = vpack.c.b16 %v698, %v694
    %v983 = vpack.c.b16 %v699, %v695
    %v984 = vpack.c.b16 %v700, %v696
    %v985 = vpack.c.b16 %v705, %v701
    %v986 = vpack.c.b16 %v706, %v702
    %v987 = vpack.c.b16 %v707, %v703
    %v988 = vpack.c.b16 %v708, %v704
    %v989 = vpack.c.b16 %v713, %v709
    %v990 = vpack.c.b16 %v714, %v710
    %v991 = vpack.c.b16 %v715, %v711
    %v992 = vpack.c.b16 %v716, %v712
    %v993 = vpack.c.b16 %v721, %v717
    %v994 = vpack.c.b16 %v722, %v718
    %v995 = vpack.c.b16 %v723, %v719
    %v996 = vpack.c.b16 %v724, %v720
    %v997 = vpack.c.b16 %v729, %v725
    %v998 = vpack.c.b16 %v730, %v726
    %v999 = vpack.c.b16 %v731, %v727
    %v1000 = vpack.c.b16 %v732, %v728
    %v1001 = vpack.c.b16 %v737, %v733
    %v1002 = vpack.c.b16 %v738, %v734
    %v1003 = vpack.c.b16 %v739, %v735
    %v1004 = vpack.c.b16 %v740, %v736
    %v1005 = vpack.c.b16 %v745, %v741
    %v1006 = vpack.c.b16 %v746, %v742
    %v1007 = vpack.c.b16 %v747, %v743
    %v1008 = vpack.c.b16 %v748, %v744
    %v1009 = vpack.c.b16 %v753, %v749
    %v1010 = vpack.c.b16 %v754, %v750
    %v1011 = vpack.c.b16 %v755, %v751
    %v1012 = vpack.c.b16 %v756, %v752
    %v1013 = vpack.c.b16 %v761, %v757
    %v1014 = vpack.c.b16 %v762, %v758
    %v1015 = vpack.c.b16 %v763, %v759
    %v1016 = vpack.c.b16 %v764, %v760
    %v1017 = vpack.c.b16 %v769, %v765
    %v1018 = vpack.c.b16 %v770, %v766
    %v1019 = vpack.c.b16 %v771, %v767
    %v1020 = vpack.c.b16 %v772, %v768
    %v1021 = vpack.c.b16 %v777, %v773
    %v1022 = vpack.c.b16 %v778, %v774
    %v1023 = vpack.c.b16 %v779, %v775
    %v1024 = vpack.c.b16 %v780, %v776
    %v1025 = vpack.c.b16 %v785, %v781
    %v1026 = vpack.c.b16 %v786, %v782
    %v1027 = vpack.c.b16 %v787, %v783
    %v1028 = vpack.c.b16 %v788, %v784
    %v1029 = vpack.c.b16 %v793, %v789
    %v1030 = vpack.c.b16 %v794, %v790
    %v1031 = vpack.c.b16 %v795, %v791
    %v1032 = vpack.c.b16 %v796, %v792
    %v1033 = vpack.c.b16 %v801, %v797
    %v1034 = vpack.c.b16 %v802, %v798
    %v1035 = vpack.c.b16 %v803, %v799
    %v1036 = vpack.c.b16 %v804, %v800
    %v1037 = vpack.c.b16 %v809, %v805
    %v1038 = vpack.c.b16 %v810, %v806
    %v1039 = vpack.c.b16 %v811, %v807
    %v1040 = vpack.c.b16 %v812, %v808
    %v1041 = vpack.c.b16 %v817, %v813
    %v1042 = vpack.c.b16 %v818, %v814
    %v1043 = vpack.c.b16 %v819, %v815
    %v1044 = vpack.c.b16 %v820, %v816
    %v1045 = vpack.c.b16 %v825, %v821
    %v1046 = vpack.c.b16 %v826, %v822
    %v1047 = vpack.c.b16 %v827, %v823
    %v1048 = vpack.c.b16 %v828, %v824
    %v1049 = vpack.c.b16 %v833, %v829
    %v1050 = vpack.c.b16 %v834, %v830
    %v1051 = vpack.c.b16 %v835, %v831
    %v1052 = vpack.c.b16 %v836, %v832
    %v1053 = vpack.c.b16 %v841, %v837
    %v1054 = vpack.c.b16 %v842, %v838
    %v1055 = vpack.c.b16 %v843, %v839
    %v1056 = vpack.c.b16 %v844, %v840
    %v1057 = vpack.c.b16 %v849, %v845
    %v1058 = vpack.c.b16 %v850, %v846
    %v1059 = vpack.c.b16 %v851, %v847
    %v1060 = vpack.c.b16 %v852, %v848
    %v1061 = vpack.c.b16 %v857, %v853
    %v1062 = vpack.c.b16 %v858, %v854
    %v1063 = vpack.c.b16 %v859, %v855
    %v1064 = vpack.c.b16 %v860, %v856
    %v1065 = vpack.c.b16 %v865, %v861
    %v1066 = vpack.c.b16 %v866, %v862
    %v1067 = vpack.c.b16 %v867, %v863
    %v1068 = vpack.c.b16 %v868, %v864
    %v1069 = vpack.c.b16 %v873, %v869
    %v1070 = vpack.c.b16 %v874, %v870
    %v1071 = vpack.c.b16 %v875, %v871
    %v1072 = vpack.c.b16 %v876, %v872
    %v1073 = vpack.c.b16 %v881, %v877
    %v1074 = vpack.c.b16 %v882, %v878
    %v1075 = vpack.c.b16 %v883, %v879
    %v1076 = vpack.c.b16 %v884, %v880
    %1269 = vmatpush.bf16.msra.mxu0 %v913
    %1270 = vmatpush.bf16.msra.mxu0 %v909
    %1271 = vmatpush.bf16.msra.mxu0 %v905
    %1272 = vmatpush.bf16.msra.mxu0 %v901
    %1273 = vmatpush.bf16.msra.mxu0 %v897
    %1274 = vmatpush.bf16.msra.mxu0 %v893
    %1275 = vmatpush.bf16.msra.mxu0 %v889
    %1276 = vmatpush.bf16.msra.mxu0 %v885
    %1277 = vmatmul.bf16.gmra.mxu0 %v101
    %v1278 = vpop.f32.mrf.mxu0
    %v1279 = vadd.f32 %v301, %v1278
    %v1280 = vpop.f32.mrf.mxu0
    %v1281 = vadd.f32 %v301, %v1280
    %1282 = vdwg.mxu0
    %1283 = vmatpush.bf16.msra.mxu0 %v945
    %1284 = vmatpush.bf16.msra.mxu0 %v941
    %1285 = vmatpush.bf16.msra.mxu0 %v937
    %1286 = vmatpush.bf16.msra.mxu0 %v933
    %1287 = vmatpush.bf16.msra.mxu0 %v929
    %1288 = vmatpush.bf16.msra.mxu0 %v925
    %1289 = vmatpush.bf16.msra.mxu0 %v921
    %1290 = vmatpush.bf16.msra.mxu0 %v917
    %1291 = vmatmul.bf16.gmra.mxu0 %v102
    %v1292 = vpop.f32.mrf.mxu0
    %v1293 = vadd.f32 %v1279, %v1292
    %v1294 = vpop.f32.mrf.mxu0
    %v1295 = vadd.f32 %v1281, %v1294
    %1296 = vdwg.mxu0
    %1297 = vmatpush.bf16.msra.mxu0 %v977
    %1298 = vmatpush.bf16.msra.mxu0 %v973
    %1299 = vmatpush.bf16.msra.mxu0 %v969
    %1300 = vmatpush.bf16.msra.mxu0 %v965
    %1301 = vmatpush.bf16.msra.mxu0 %v961
    %1302 = vmatpush.bf16.msra.mxu0 %v957
    %1303 = vmatpush.bf16.msra.mxu0 %v953
    %1304 = vmatpush.bf16.msra.mxu0 %v949
    %1305 = vmatmul.bf16.gmra.mxu0 %v103
    %v1306 = vpop.f32.mrf.mxu0
    %v1307 = vadd.f32 %v1293, %v1306
    %v1308 = vpop.f32.mrf.mxu0
    %v1309 = vadd.f32 %v1295, %v1308
    %1310 = vdwg.mxu0
    %1311 = vmatpush.bf16.msra.mxu0 %v1009
    %1312 = vmatpush.bf16.msra.mxu0 %v1005
    %1313 = vmatpush.bf16.msra.mxu0 %v1001
    %1314 = vmatpush.bf16.msra.mxu0 %v997
    %1315 = vmatpush.bf16.msra.mxu0 %v993
    %1316 = vmatpush.bf16.msra.mxu0 %v989
    %1317 = vmatpush.bf16.msra.mxu0 %v985
    %1318 = vmatpush.bf16.msra.mxu0 %v981
    %1319 = vmatmul.bf16.gmra.mxu0 %v104
    %v1320 = vpop.f32.mrf.mxu0
    %v1321 = vadd.f32 %v1307, %v1320
    %v1322 = vpop.f32.mrf.mxu0
    %v1323 = vadd.f32 %v1309, %v1322
    %1324 = vdwg.mxu0
    %1325 = vmatpush.bf16.msra.mxu0 %v1041
    %1326 = vmatpush.bf16.msra.mxu0 %v1037
    %1327 = vmatpush.bf16.msra.mxu0 %v1033
    %1328 = vmatpush.bf16.msra.mxu0 %v1029
    %1329 = vmatpush.bf16.msra.mxu0 %v1025
    %1330 = vmatpush.bf16.msra.mxu0 %v1021
    %1331 = vmatpush.bf16.msra.mxu0 %v1017
    %1332 = vmatpush.bf16.msra.mxu0 %v1013
    %1333 = vmatmul.bf16.gmra.mxu0 %v105
    %v1334 = vpop.f32.mrf.mxu0
    %v1335 = vadd.f32 %v1321, %v1334
    %v1336 = vpop.f32.mrf.mxu0
    %v1337 = vadd.f32 %v1323, %v1336
    %1338 = vdwg.mxu0
    %1339 = vmatpush.bf16.msra.mxu0 %v1073
    %1340 = vmatpush.bf16.msra.mxu0 %v1069
    %1341 = vmatpush.bf16.msra.mxu0 %v1065
    %1342 = vmatpush.bf16.msra.mxu0 %v1061
    %1343 = vmatpush.bf16.msra.mxu0 %v1057
    %1344 = vmatpush.bf16.msra.mxu0 %v1053
    %1345 = vmatpush.bf16.msra.mxu0 %v1049
    %1346 = vmatpush.bf16.msra.mxu0 %v1045
    %1347 = vmatmul.bf16.gmra.mxu0 %v106
    %v1348 = vpop.f32.mrf.mxu0
    %v1349 = vadd.f32 %v1335, %v1348
    %v1350 = vpop.f32.mrf.mxu0
    %v1351 = vadd.f32 %v1337, %v1350
    %1352 = vdwg.mxu0
    %1353 = vmatpush.bf16.msra.mxu0 %v914
    %1354 = vmatpush.bf16.msra.mxu0 %v910
    %1355 = vmatpush.bf16.msra.mxu0 %v906
    %1356 = vmatpush.bf16.msra.mxu0 %v902
    %1357 = vmatpush.bf16.msra.mxu0 %v898
    %1358 = vmatpush.bf16.msra.mxu0 %v894
    %1359 = vmatpush.bf16.msra.mxu0 %v890
    %1360 = vmatpush.bf16.msra.mxu0 %v886
    %1361 = vmatmul.bf16.gmra.mxu0 %v101
    %v1362 = vpop.f32.mrf.mxu0
    %v1363 = vadd.f32 %v302, %v1362
    %v1364 = vpop.f32.mrf.mxu0
    %v1365 = vadd.f32 %v302, %v1364
    %1366 = vdwg.mxu0
    %1367 = vmatpush.bf16.msra.mxu0 %v946
    %1368 = vmatpush.bf16.msra.mxu0 %v942
    %1369 = vmatpush.bf16.msra.mxu0 %v938
    %1370 = vmatpush.bf16.msra.mxu0 %v934
    %1371 = vmatpush.bf16.msra.mxu0 %v930
    %1372 = vmatpush.bf16.msra.mxu0 %v926
    %1373 = vmatpush.bf16.msra.mxu0 %v922
    %1374 = vmatpush.bf16.msra.mxu0 %v918
    %1375 = vmatmul.bf16.gmra.mxu0 %v102
    %v1376 = vpop.f32.mrf.mxu0
    %v1377 = vadd.f32 %v1363, %v1376
    %v1378 = vpop.f32.mrf.mxu0
    %v1379 = vadd.f32 %v1365, %v1378
    %1380 = vdwg.mxu0
    %1381 = vmatpush.bf16.msra.mxu0 %v978
    %1382 = vmatpush.bf16.msra.mxu0 %v974
    %1383 = vmatpush.bf16.msra.mxu0 %v970
    %1384 = vmatpush.bf16.msra.mxu0 %v966
    %1385 = vmatpush.bf16.msra.mxu0 %v962
    %1386 = vmatpush.bf16.msra.mxu0 %v958
    %1387 = vmatpush.bf16.msra.mxu0 %v954
    %1388 = vmatpush.bf16.msra.mxu0 %v950
    %1389 = vmatmul.bf16.gmra.mxu0 %v103
    %v1390 = vpop.f32.mrf.mxu0
    %v1391 = vadd.f32 %v1377, %v1390
    %v1392 = vpop.f32.mrf.mxu0
    %v1393 = vadd.f32 %v1379, %v1392
    %1394 = vdwg.mxu0
    %1395 = vmatpush.bf16.msra.mxu0 %v1010
    %1396 = vmatpush.bf16.msra.mxu0 %v1006
    %1397 = vmatpush.bf16.msra.mxu0 %v1002
    %1398 = vmatpush.bf16.msra.mxu0 %v998
    %1399 = vmatpush.bf16.msra.mxu0 %v994
    %1400 = vmatpush.bf16.msra.mxu0 %v990
    %1401 = vmatpush.bf16.msra.mxu0 %v986
    %1402 = vmatpush.bf16.msra.mxu0 %v982
    %1403 = vmatmul.bf16.gmra.mxu0 %v104
    %v1404 = vpop.f32.mrf.mxu0
    %v1405 = vadd.f32 %v1391, %v1404
    %v1406 = vpop.f32.mrf.mxu0
    %v1407 = vadd.f32 %v1393, %v1406
    %1408 = vdwg.mxu0
    %1409 = vmatpush.bf16.msra.mxu0 %v1042
    %1410 = vmatpush.bf16.msra.mxu0 %v1038
    %1411 = vmatpush.bf16.msra.mxu0 %v1034
    %1412 = vmatpush.bf16.msra.mxu0 %v1030
    %1413 = vmatpush.bf16.msra.mxu0 %v1026
    %1414 = vmatpush.bf16.msra.mxu0 %v1022
    %1415 = vmatpush.bf16.msra.mxu0 %v1018
    %1416 = vmatpush.bf16.msra.mxu0 %v1014
    %1417 = vmatmul.bf16.gmra.mxu0 %v105
    %v1418 = vpop.f32.mrf.mxu0
    %v1419 = vadd.f32 %v1405, %v1418
    %v1420 = vpop.f32.mrf.mxu0
    %v1421 = vadd.f32 %v1407, %v1420
    %1422 = vdwg.mxu0
    %1423 = vmatpush.bf16.msra.mxu0 %v1074
    %1424 = vmatpush.bf16.msra.mxu0 %v1070
    %1425 = vmatpush.bf16.msra.mxu0 %v1066
    %1426 = vmatpush.bf16.msra.mxu0 %v1062
    %1427 = vmatpush.bf16.msra.mxu0 %v1058
    %1428 = vmatpush.bf16.msra.mxu0 %v1054
    %1429 = vmatpush.bf16.msra.mxu0 %v1050
    %1430 = vmatpush.bf16.msra.mxu0 %v1046
    %1431 = vmatmul.bf16.gmra.mxu0 %v106
    %v1432 = vpop.f32.mrf.mxu0
    %v1433 = vadd.f32 %v1419, %v1432
    %v1434 = vpop.f32.mrf.mxu0
    %v1435 = vadd.f32 %v1421, %v1434
    %1436 = vdwg.mxu0
    %1437 = vmatpush.bf16.msra.mxu0 %v915
    %1438 = vmatpush.bf16.msra.mxu0 %v911
    %1439 = vmatpush.bf16.msra.mxu0 %v907
    %1440 = vmatpush.bf16.msra.mxu0 %v903
    %1441 = vmatpush.bf16.msra.mxu0 %v899
    %1442 = vmatpush.bf16.msra.mxu0 %v895
    %1443 = vmatpush.bf16.msra.mxu0 %v891
    %1444 = vmatpush.bf16.msra.mxu0 %v887
    %1445 = vmatmul.bf16.gmra.mxu0 %v101
    %v1446 = vpop.f32.mrf.mxu0
    %v1447 = vadd.f32 %v303, %v1446
    %v1448 = vpop.f32.mrf.mxu0
    %v1449 = vadd.f32 %v303, %v1448
    %1450 = vdwg.mxu0
    %1451 = vmatpush.bf16.msra.mxu0 %v947
    %1452 = vmatpush.bf16.msra.mxu0 %v943
    %1453 = vmatpush.bf16.msra.mxu0 %v939
    %1454 = vmatpush.bf16.msra.mxu0 %v935
    %1455 = vmatpush.bf16.msra.mxu0 %v931
    %1456 = vmatpush.bf16.msra.mxu0 %v927
    %1457 = vmatpush.bf16.msra.mxu0 %v923
    %1458 = vmatpush.bf16.msra.mxu0 %v919
    %1459 = vmatmul.bf16.gmra.mxu0 %v102
    %v1460 = vpop.f32.mrf.mxu0
    %v1461 = vadd.f32 %v1447, %v1460
    %v1462 = vpop.f32.mrf.mxu0
    %v1463 = vadd.f32 %v1449, %v1462
    %1464 = vdwg.mxu0
    %1465 = vmatpush.bf16.msra.mxu0 %v979
    %1466 = vmatpush.bf16.msra.mxu0 %v975
    %1467 = vmatpush.bf16.msra.mxu0 %v971
    %1468 = vmatpush.bf16.msra.mxu0 %v967
    %1469 = vmatpush.bf16.msra.mxu0 %v963
    %1470 = vmatpush.bf16.msra.mxu0 %v959
    %1471 = vmatpush.bf16.msra.mxu0 %v955
    %1472 = vmatpush.bf16.msra.mxu0 %v951
    %1473 = vmatmul.bf16.gmra.mxu0 %v103
    %v1474 = vpop.f32.mrf.mxu0
    %v1475 = vadd.f32 %v1461, %v1474
    %v1476 = vpop.f32.mrf.mxu0
    %v1477 = vadd.f32 %v1463, %v1476
    %1478 = vdwg.mxu0
    %1479 = vmatpush.bf16.msra.mxu0 %v1011
    %1480 = vmatpush.bf16.msra.mxu0 %v1007
    %1481 = vmatpush.bf16.msra.mxu0 %v1003
    %1482 = vmatpush.bf16.msra.mxu0 %v999
    %1483 = vmatpush.bf16.msra.mxu0 %v995
    %1484 = vmatpush.bf16.msra.mxu0 %v991
    %1485 = vmatpush.bf16.msra.mxu0 %v987
    %1486 = vmatpush.bf16.msra.mxu0 %v983
    %1487 = vmatmul.bf16.gmra.mxu0 %v104
    %v1488 = vpop.f32.mrf.mxu0
    %v1489 = vadd.f32 %v1475, %v1488
    %v1490 = vpop.f32.mrf.mxu0
    %v1491 = vadd.f32 %v1477, %v1490
    %1492 = vdwg.mxu0
    %1493 = vmatpush.bf16.msra.mxu0 %v1043
    %1494 = vmatpush.bf16.msra.mxu0 %v1039
    %1495 = vmatpush.bf16.msra.mxu0 %v1035
    %1496 = vmatpush.bf16.msra.mxu0 %v1031
    %1497 = vmatpush.bf16.msra.mxu0 %v1027
    %1498 = vmatpush.bf16.msra.mxu0 %v1023
    %1499 = vmatpush.bf16.msra.mxu0 %v1019
    %1500 = vmatpush.bf16.msra.mxu0 %v1015
    %1501 = vmatmul.bf16.gmra.mxu0 %v105
    %v1502 = vpop.f32.mrf.mxu0
    %v1503 = vadd.f32 %v1489, %v1502
    %v1504 = vpop.f32.mrf.mxu0
    %v1505 = vadd.f32 %v1491, %v1504
    %1506 = vdwg.mxu0
    %1507 = vmatpush.bf16.msra.mxu0 %v1075
    %1508 = vmatpush.bf16.msra.mxu0 %v1071
    %1509 = vmatpush.bf16.msra.mxu0 %v1067
    %1510 = vmatpush.bf16.msra.mxu0 %v1063
    %1511 = vmatpush.bf16.msra.mxu0 %v1059
    %1512 = vmatpush.bf16.msra.mxu0 %v1055
    %1513 = vmatpush.bf16.msra.mxu0 %v1051
    %1514 = vmatpush.bf16.msra.mxu0 %v1047
    %1515 = vmatmul.bf16.gmra.mxu0 %v106
    %v1516 = vpop.f32.mrf.mxu0
    %v1517 = vadd.f32 %v1503, %v1516
    %v1518 = vpop.f32.mrf.mxu0
    %v1519 = vadd.f32 %v1505, %v1518
    %1520 = vdwg.mxu0
    %1521 = vmatpush.bf16.msra.mxu0 %v916
    %1522 = vmatpush.bf16.msra.mxu0 %v912
    %1523 = vmatpush.bf16.msra.mxu0 %v908
    %1524 = vmatpush.bf16.msra.mxu0 %v904
    %1525 = vmatpush.bf16.msra.mxu0 %v900
    %1526 = vmatpush.bf16.msra.mxu0 %v896
    %1527 = vmatpush.bf16.msra.mxu0 %v892
    %1528 = vmatpush.bf16.msra.mxu0 %v888
    %1529 = vmatmul.bf16.gmra.mxu0 %v101
    %v1530 = vpop.f32.mrf.mxu0
    %v1531 = vadd.f32 %v304, %v1530
    %v1532 = vpop.f32.mrf.mxu0
    %v1533 = vadd.f32 %v304, %v1532
    %1534 = vdwg.mxu0
    %1535 = vmatpush.bf16.msra.mxu0 %v948
    %1536 = vmatpush.bf16.msra.mxu0 %v944
    %1537 = vmatpush.bf16.msra.mxu0 %v940
    %1538 = vmatpush.bf16.msra.mxu0 %v936
    %1539 = vmatpush.bf16.msra.mxu0 %v932
    %1540 = vmatpush.bf16.msra.mxu0 %v928
    %1541 = vmatpush.bf16.msra.mxu0 %v924
    %1542 = vmatpush.bf16.msra.mxu0 %v920
    %1543 = vmatmul.bf16.gmra.mxu0 %v102
    %v1544 = vpop.f32.mrf.mxu0
    %v1545 = vadd.f32 %v1531, %v1544
    %v1546 = vpop.f32.mrf.mxu0
    %v1547 = vadd.f32 %v1533, %v1546
    %1548 = vdwg.mxu0
    %1549 = vmatpush.bf16.msra.mxu0 %v980
    %1550 = vmatpush.bf16.msra.mxu0 %v976
    %1551 = vmatpush.bf16.msra.mxu0 %v972
    %1552 = vmatpush.bf16.msra.mxu0 %v968
    %1553 = vmatpush.bf16.msra.mxu0 %v964
    %1554 = vmatpush.bf16.msra.mxu0 %v960
    %1555 = vmatpush.bf16.msra.mxu0 %v956
    %1556 = vmatpush.bf16.msra.mxu0 %v952
    %1557 = vmatmul.bf16.gmra.mxu0 %v103
    %v1558 = vpop.f32.mrf.mxu0
    %v1559 = vadd.f32 %v1545, %v1558
    %v1560 = vpop.f32.mrf.mxu0
    %v1561 = vadd.f32 %v1547, %v1560
    %1562 = vdwg.mxu0
    %1563 = vmatpush.bf16.msra.mxu0 %v1012
    %1564 = vmatpush.bf16.msra.mxu0 %v1008
    %1565 = vmatpush.bf16.msra.mxu0 %v1004
    %1566 = vmatpush.bf16.msra.mxu0 %v1000
    %1567 = vmatpush.bf16.msra.mxu0 %v996
    %1568 = vmatpush.bf16.msra.mxu0 %v992
    %1569 = vmatpush.bf16.msra.mxu0 %v988
    %1570 = vmatpush.bf16.msra.mxu0 %v984
    %1571 = vmatmul.bf16.gmra.mxu0 %v104
    %v1572 = vpop.f32.mrf.mxu0
    %v1573 = vadd.f32 %v1559, %v1572
    %v1574 = vpop.f32.mrf.mxu0
    %v1575 = vadd.f32 %v1561, %v1574
    %1576 = vdwg.mxu0
    %1577 = vmatpush.bf16.msra.mxu0 %v1044
    %1578 = vmatpush.bf16.msra.mxu0 %v1040
    %1579 = vmatpush.bf16.msra.mxu0 %v1036
    %1580 = vmatpush.bf16.msra.mxu0 %v1032
    %1581 = vmatpush.bf16.msra.mxu0 %v1028
    %1582 = vmatpush.bf16.msra.mxu0 %v1024
    %1583 = vmatpush.bf16.msra.mxu0 %v1020
    %1584 = vmatpush.bf16.msra.mxu0 %v1016
    %1585 = vmatmul.bf16.gmra.mxu0 %v105
    %v1586 = vpop.f32.mrf.mxu0
    %v1587 = vadd.f32 %v1573, %v1586
    %v1588 = vpop.f32.mrf.mxu0
    %v1589 = vadd.f32 %v1575, %v1588
    %1590 = vdwg.mxu0
    %1591 = vmatpush.bf16.msra.mxu0 %v1076
    %1592 = vmatpush.bf16.msra.mxu0 %v1072
    %1593 = vmatpush.bf16.msra.mxu0 %v1068
    %1594 = vmatpush.bf16.msra.mxu0 %v1064
    %1595 = vmatpush.bf16.msra.mxu0 %v1060
    %1596 = vmatpush.bf16.msra.mxu0 %v1056
    %1597 = vmatpush.bf16.msra.mxu0 %v1052
    %1598 = vmatpush.bf16.msra.mxu0 %v1048
    %1599 = vmatmul.bf16.gmra.mxu0 %v106
    %v1600 = vpop.f32.mrf.mxu0
    %v1601 = vadd.f32 %v1587, %v1600
    %v1602 = vpop.f32.mrf.mxu0
    %v1603 = vadd.f32 %v1589, %v1602
    %1604 = vdwg.mxu0
    %v1605 = vmax.f32 %v1349, 0.0
    %v1606 = vmax.f32 %v1433, 0.0
    %v1607 = vmax.f32 %v1517, 0.0
    %v1608 = vmax.f32 %v1601, 0.0
    %v1609 = vmax.f32 %v1351, 0.0
    %v1610 = vmax.f32 %v1435, 0.0
    %v1611 = vmax.f32 %v1519, 0.0
    %v1612 = vmax.f32 %v1603, 0.0
    %v1613 = vpack.c.bf16 %v1609, %v1605
    %v1614 = vpack.c.bf16 %v1610, %v1606
    %v1615 = vpack.c.bf16 %v1611, %v1607
    %v1616 = vpack.c.bf16 %v1612, %v1608
    %v1617 = vld [vmem:[#allocation8] sm:$0xff]
    %v1618 = vld [vmem:[#allocation8 + $0x8] sm:$0xff]
    %v1619 = vld [vmem:[#allocation8 + $0x10] sm:$0xff]
    %v1620 = vld [vmem:[#allocation8 + $0x18] sm:$0xff]
    %v1621 = vld [vmem:[#allocation8 + $0x20] sm:$0xff]
    %v1622 = vld [vmem:[#allocation8 + $0x28] sm:$0xff]
    %v1623 = vld [vmem:[#allocation8 + $0x30] sm:$0xff]
    %v1624 = vld [vmem:[#allocation8 + $0x38] sm:$0xff]
    %v1625 = vld [vmem:[#allocation8 + $0x40] sm:$0xff]
    %v1626 = vld [vmem:[#allocation8 + $0x48] sm:$0xff]
    %v1627 = vld [vmem:[#allocation8 + $0x50] sm:$0xff]
    %v1628 = vld [vmem:[#allocation8 + $0x58] sm:$0xff]
    %v1629 = vld [vmem:[#allocation8 + $0x60] sm:$0xff]
    %v1630 = vld [vmem:[#allocation8 + $0x68] sm:$0xff]
    %v1631 = vld [vmem:[#allocation8 + $0x70] sm:$0xff]
    %v1632 = vld [vmem:[#allocation8 + $0x78] sm:$0xff]
    %v1633 = vld [vmem:[#allocation8 + $0x80] sm:$0xff]
    %v1634 = vld [vmem:[#allocation8 + $0x88] sm:$0xff]
    %v1635 = vld [vmem:[#allocation8 + $0x90] sm:$0xff]
    %v1636 = vld [vmem:[#allocation8 + $0x98] sm:$0xff]
    %v1637 = vld [vmem:[#allocation8 + $0xa0] sm:$0xff]
    %v1638 = vld [vmem:[#allocation8 + $0xa8] sm:$0xff]
    %v1639 = vld [vmem:[#allocation8 + $0xb0] sm:$0xff]
    %v1640 = vld [vmem:[#allocation8 + $0xb8] sm:$0xff]
    %v1641 = vld [vmem:[#allocation8 + $0xc0] sm:$0xff]
    %v1642 = vld [vmem:[#allocation8 + $0xc8] sm:$0xff]
    %v1643 = vld [vmem:[#allocation8 + $0xd0] sm:$0xff]
    %v1644 = vld [vmem:[#allocation8 + $0xd8] sm:$0xff]
    %v1645 = vld [vmem:[#allocation8 + $0xe0] sm:$0xff]
    %v1646 = vld [vmem:[#allocation8 + $0xe8] sm:$0xff]
    %v1647 = vld [vmem:[#allocation8 + $0xf0] sm:$0xff]
    %v1648 = vld [vmem:[#allocation8 + $0xf8] sm:$0xff]
    %v1649 = vld [vmem:[#allocation8 + $0x100] sm:$0xff]
    %v1650 = vld [vmem:[#allocation8 + $0x108] sm:$0xff]
    %v1651 = vld [vmem:[#allocation8 + $0x110] sm:$0xff]
    %v1652 = vld [vmem:[#allocation8 + $0x118] sm:$0xff]
    %v1653 = vld [vmem:[#allocation8 + $0x120] sm:$0xff]
    %v1654 = vld [vmem:[#allocation8 + $0x128] sm:$0xff]
    %v1655 = vld [vmem:[#allocation8 + $0x130] sm:$0xff]
    %v1656 = vld [vmem:[#allocation8 + $0x138] sm:$0xff]
    %v1657 = vld [vmem:[#allocation8 + $0x140] sm:$0xff]
    %v1658 = vld [vmem:[#allocation8 + $0x148] sm:$0xff]
    %v1659 = vld [vmem:[#allocation8 + $0x150] sm:$0xff]
    %v1660 = vld [vmem:[#allocation8 + $0x158] sm:$0xff]
    %v1661 = vld [vmem:[#allocation8 + $0x160] sm:$0xff]
    %v1662 = vld [vmem:[#allocation8 + $0x168] sm:$0xff]
    %v1663 = vld [vmem:[#allocation8 + $0x170] sm:$0xff]
    %v1664 = vld [vmem:[#allocation8 + $0x178] sm:$0xff]
    %v1665 = vld [vmem:[#allocation8 + $0x180] sm:$0xff]
    %v1666 = vld [vmem:[#allocation8 + $0x188] sm:$0xff]
    %v1667 = vld [vmem:[#allocation8 + $0x190] sm:$0xff]
    %v1668 = vld [vmem:[#allocation8 + $0x198] sm:$0xff]
    %v1669 = vld [vmem:[#allocation8 + $0x1a0] sm:$0xff]
    %v1670 = vld [vmem:[#allocation8 + $0x1a8] sm:$0xff]
    %v1671 = vld [vmem:[#allocation8 + $0x1b0] sm:$0xff]
    %v1672 = vld [vmem:[#allocation8 + $0x1b8] sm:$0xff]
    %v1673 = vld [vmem:[#allocation8 + $0x1c0] sm:$0xff]
    %v1674 = vld [vmem:[#allocation8 + $0x1c8] sm:$0xff]
    %v1675 = vld [vmem:[#allocation8 + $0x1d0] sm:$0xff]
    %v1676 = vld [vmem:[#allocation8 + $0x1d8] sm:$0xff]
    %v1677 = vld [vmem:[#allocation8 + $0x1e0] sm:$0xff]
    %v1678 = vld [vmem:[#allocation8 + $0x1e8] sm:$0xff]
    %v1679 = vld [vmem:[#allocation8 + $0x1f0] sm:$0xff]
    %v1680 = vld [vmem:[#allocation8 + $0x1f8] sm:$0xff]
    %v1681 = vld [vmem:[%s4] sm:$0x3]
    %v1683 = vperm.slane %v1681, 0
    %v1684 = vperm.slane %v1681, 1
    %v1751 = vunpack.c.l.b16 %v1617
    %v1752 = vunpack.c.h.b16 %v1617
    %v1753 = vunpack.c.l.b16 %v1618
    %v1754 = vunpack.c.h.b16 %v1618
    %v1755 = vunpack.c.l.b16 %v1619
    %v1756 = vunpack.c.h.b16 %v1619
    %v1757 = vunpack.c.l.b16 %v1620
    %v1758 = vunpack.c.h.b16 %v1620
    %v1759 = vunpack.c.l.b16 %v1621
    %v1760 = vunpack.c.h.b16 %v1621
    %v1761 = vunpack.c.l.b16 %v1622
    %v1762 = vunpack.c.h.b16 %v1622
    %v1763 = vunpack.c.l.b16 %v1623
    %v1764 = vunpack.c.h.b16 %v1623
    %v1765 = vunpack.c.l.b16 %v1624
    %v1766 = vunpack.c.h.b16 %v1624
    %v1767 = vunpack.c.l.b16 %v1625
    %v1768 = vunpack.c.h.b16 %v1625
    %v1769 = vunpack.c.l.b16 %v1626
    %v1770 = vunpack.c.h.b16 %v1626
    %v1771 = vunpack.c.l.b16 %v1627
    %v1772 = vunpack.c.h.b16 %v1627
    %v1773 = vunpack.c.l.b16 %v1628
    %v1774 = vunpack.c.h.b16 %v1628
    %v1775 = vunpack.c.l.b16 %v1629
    %v1776 = vunpack.c.h.b16 %v1629
    %v1777 = vunpack.c.l.b16 %v1630
    %v1778 = vunpack.c.h.b16 %v1630
    %v1779 = vunpack.c.l.b16 %v1631
    %v1780 = vunpack.c.h.b16 %v1631
    %v1781 = vunpack.c.l.b16 %v1632
    %v1782 = vunpack.c.h.b16 %v1632
    %v1783 = vunpack.c.l.b16 %v1633
    %v1784 = vunpack.c.h.b16 %v1633
    %v1785 = vunpack.c.l.b16 %v1634
    %v1786 = vunpack.c.h.b16 %v1634
    %v1787 = vunpack.c.l.b16 %v1635
    %v1788 = vunpack.c.h.b16 %v1635
    %v1789 = vunpack.c.l.b16 %v1636
    %v1790 = vunpack.c.h.b16 %v1636
    %v1791 = vunpack.c.l.b16 %v1637
    %v1792 = vunpack.c.h.b16 %v1637
    %v1793 = vunpack.c.l.b16 %v1638
    %v1794 = vunpack.c.h.b16 %v1638
    %v1795 = vunpack.c.l.b16 %v1639
    %v1796 = vunpack.c.h.b16 %v1639
    %v1797 = vunpack.c.l.b16 %v1640
    %v1798 = vunpack.c.h.b16 %v1640
    %v1799 = vunpack.c.l.b16 %v1641
    %v1800 = vunpack.c.h.b16 %v1641
    %v1801 = vunpack.c.l.b16 %v1642
    %v1802 = vunpack.c.h.b16 %v1642
    %v1803 = vunpack.c.l.b16 %v1643
    %v1804 = vunpack.c.h.b16 %v1643
    %v1805 = vunpack.c.l.b16 %v1644
    %v1806 = vunpack.c.h.b16 %v1644
    %v1807 = vunpack.c.l.b16 %v1645
    %v1808 = vunpack.c.h.b16 %v1645
    %v1809 = vunpack.c.l.b16 %v1646
    %v1810 = vunpack.c.h.b16 %v1646
    %v1811 = vunpack.c.l.b16 %v1647
    %v1812 = vunpack.c.h.b16 %v1647
    %v1813 = vunpack.c.l.b16 %v1648
    %v1814 = vunpack.c.h.b16 %v1648
    %v1815 = vunpack.c.l.b16 %v1649
    %v1816 = vunpack.c.h.b16 %v1649
    %v1817 = vunpack.c.l.b16 %v1650
    %v1818 = vunpack.c.h.b16 %v1650
    %v1819 = vunpack.c.l.b16 %v1651
    %v1820 = vunpack.c.h.b16 %v1651
    %v1821 = vunpack.c.l.b16 %v1652
    %v1822 = vunpack.c.h.b16 %v1652
    %v1823 = vunpack.c.l.b16 %v1653
    %v1824 = vunpack.c.h.b16 %v1653
    %v1825 = vunpack.c.l.b16 %v1654
    %v1826 = vunpack.c.h.b16 %v1654
    %v1827 = vunpack.c.l.b16 %v1655
    %v1828 = vunpack.c.h.b16 %v1655
    %v1829 = vunpack.c.l.b16 %v1656
    %v1830 = vunpack.c.h.b16 %v1656
    %v1831 = vunpack.c.l.b16 %v1657
    %v1832 = vunpack.c.h.b16 %v1657
    %v1833 = vunpack.c.l.b16 %v1658
    %v1834 = vunpack.c.h.b16 %v1658
    %v1835 = vunpack.c.l.b16 %v1659
    %v1836 = vunpack.c.h.b16 %v1659
    %v1837 = vunpack.c.l.b16 %v1660
    %v1838 = vunpack.c.h.b16 %v1660
    %v1839 = vunpack.c.l.b16 %v1661
    %v1840 = vunpack.c.h.b16 %v1661
    %v1841 = vunpack.c.l.b16 %v1662
    %v1842 = vunpack.c.h.b16 %v1662
    %v1843 = vunpack.c.l.b16 %v1663
    %v1844 = vunpack.c.h.b16 %v1663
    %v1845 = vunpack.c.l.b16 %v1664
    %v1846 = vunpack.c.h.b16 %v1664
    %v1847 = vunpack.c.l.b16 %v1665
    %v1848 = vunpack.c.h.b16 %v1665
    %v1849 = vunpack.c.l.b16 %v1666
    %v1850 = vunpack.c.h.b16 %v1666
    %v1851 = vunpack.c.l.b16 %v1667
    %v1852 = vunpack.c.h.b16 %v1667
    %v1853 = vunpack.c.l.b16 %v1668
    %v1854 = vunpack.c.h.b16 %v1668
    %v1855 = vunpack.c.l.b16 %v1669
    %v1856 = vunpack.c.h.b16 %v1669
    %v1857 = vunpack.c.l.b16 %v1670
    %v1858 = vunpack.c.h.b16 %v1670
    %v1859 = vunpack.c.l.b16 %v1671
    %v1860 = vunpack.c.h.b16 %v1671
    %v1861 = vunpack.c.l.b16 %v1672
    %v1862 = vunpack.c.h.b16 %v1672
    %v1863 = vunpack.c.l.b16 %v1673
    %v1864 = vunpack.c.h.b16 %v1673
    %v1865 = vunpack.c.l.b16 %v1674
    %v1866 = vunpack.c.h.b16 %v1674
    %v1867 = vunpack.c.l.b16 %v1675
    %v1868 = vunpack.c.h.b16 %v1675
    %v1869 = vunpack.c.l.b16 %v1676
    %v1870 = vunpack.c.h.b16 %v1676
    %v1871 = vunpack.c.l.b16 %v1677
    %v1872 = vunpack.c.h.b16 %v1677
    %v1873 = vunpack.c.l.b16 %v1678
    %v1874 = vunpack.c.h.b16 %v1678
    %v1875 = vunpack.c.l.b16 %v1679
    %v1876 = vunpack.c.h.b16 %v1679
    %v1877 = vunpack.c.l.b16 %v1680
    %v1878 = vunpack.c.h.b16 %v1680
    %v1879 = vpack.c.b16 %v1753, %v1751
    %v1880 = vpack.c.b16 %v1754, %v1752
    %v1881 = vpack.c.b16 %v1757, %v1755
    %v1882 = vpack.c.b16 %v1758, %v1756
    %v1883 = vpack.c.b16 %v1761, %v1759
    %v1884 = vpack.c.b16 %v1762, %v1760
    %v1885 = vpack.c.b16 %v1765, %v1763
    %v1886 = vpack.c.b16 %v1766, %v1764
    %v1887 = vpack.c.b16 %v1769, %v1767
    %v1888 = vpack.c.b16 %v1770, %v1768
    %v1889 = vpack.c.b16 %v1773, %v1771
    %v1890 = vpack.c.b16 %v1774, %v1772
    %v1891 = vpack.c.b16 %v1777, %v1775
    %v1892 = vpack.c.b16 %v1778, %v1776
    %v1893 = vpack.c.b16 %v1781, %v1779
    %v1894 = vpack.c.b16 %v1782, %v1780
    %v1895 = vpack.c.b16 %v1785, %v1783
    %v1896 = vpack.c.b16 %v1786, %v1784
    %v1897 = vpack.c.b16 %v1789, %v1787
    %v1898 = vpack.c.b16 %v1790, %v1788
    %v1899 = vpack.c.b16 %v1793, %v1791
    %v1900 = vpack.c.b16 %v1794, %v1792
    %v1901 = vpack.c.b16 %v1797, %v1795
    %v1902 = vpack.c.b16 %v1798, %v1796
    %v1903 = vpack.c.b16 %v1801, %v1799
    %v1904 = vpack.c.b16 %v1802, %v1800
    %v1905 = vpack.c.b16 %v1805, %v1803
    %v1906 = vpack.c.b16 %v1806, %v1804
    %v1907 = vpack.c.b16 %v1809, %v1807
    %v1908 = vpack.c.b16 %v1810, %v1808
    %v1909 = vpack.c.b16 %v1813, %v1811
    %v1910 = vpack.c.b16 %v1814, %v1812
    %v1911 = vpack.c.b16 %v1817, %v1815
    %v1912 = vpack.c.b16 %v1818, %v1816
    %v1913 = vpack.c.b16 %v1821, %v1819
    %v1914 = vpack.c.b16 %v1822, %v1820
    %v1915 = vpack.c.b16 %v1825, %v1823
    %v1916 = vpack.c.b16 %v1826, %v1824
    %v1917 = vpack.c.b16 %v1829, %v1827
    %v1918 = vpack.c.b16 %v1830, %v1828
    %v1919 = vpack.c.b16 %v1833, %v1831
    %v1920 = vpack.c.b16 %v1834, %v1832
    %v1921 = vpack.c.b16 %v1837, %v1835
    %v1922 = vpack.c.b16 %v1838, %v1836
    %v1923 = vpack.c.b16 %v1841, %v1839
    %v1924 = vpack.c.b16 %v1842, %v1840
    %v1925 = vpack.c.b16 %v1845, %v1843
    %v1926 = vpack.c.b16 %v1846, %v1844
    %v1927 = vpack.c.b16 %v1849, %v1847
    %v1928 = vpack.c.b16 %v1850, %v1848
    %v1929 = vpack.c.b16 %v1853, %v1851
    %v1930 = vpack.c.b16 %v1854, %v1852
    %v1931 = vpack.c.b16 %v1857, %v1855
    %v1932 = vpack.c.b16 %v1858, %v1856
    %v1933 = vpack.c.b16 %v1861, %v1859
    %v1934 = vpack.c.b16 %v1862, %v1860
    %v1935 = vpack.c.b16 %v1865, %v1863
    %v1936 = vpack.c.b16 %v1866, %v1864
    %v1937 = vpack.c.b16 %v1869, %v1867
    %v1938 = vpack.c.b16 %v1870, %v1868
    %v1939 = vpack.c.b16 %v1873, %v1871
    %v1940 = vpack.c.b16 %v1874, %v1872
    %v1941 = vpack.c.b16 %v1877, %v1875
    %v1942 = vpack.c.b16 %v1878, %v1876
    %2007 = vmatpush.bf16.msra.mxu0 %v1893
    %2008 = vmatpush.bf16.msra.mxu0 %v1891
    %2009 = vmatpush.bf16.msra.mxu0 %v1889
    %2010 = vmatpush.bf16.msra.mxu0 %v1887
    %2011 = vmatpush.bf16.msra.mxu0 %v1885
    %2012 = vmatpush.bf16.msra.mxu0 %v1883
    %2013 = vmatpush.bf16.msra.mxu0 %v1881
    %2014 = vmatpush.bf16.msra.mxu0 %v1879
    %2015 = vmatmul.bf16.gmra.mxu0 %v1613
    %v2016 = vpop.f32.mrf.mxu0
    %v2017 = vadd.f32 %v1683, %v2016
    %v2018 = vpop.f32.mrf.mxu0
    %v2019 = vadd.f32 %v1683, %v2018
    %2020 = vdwg.mxu0
    %2021 = vmatpush.bf16.msra.mxu0 %v1909
    %2022 = vmatpush.bf16.msra.mxu0 %v1907
    %2023 = vmatpush.bf16.msra.mxu0 %v1905
    %2024 = vmatpush.bf16.msra.mxu0 %v1903
    %2025 = vmatpush.bf16.msra.mxu0 %v1901
    %2026 = vmatpush.bf16.msra.mxu0 %v1899
    %2027 = vmatpush.bf16.msra.mxu0 %v1897
    %2028 = vmatpush.bf16.msra.mxu0 %v1895
    %2029 = vmatmul.bf16.gmra.mxu0 %v1614
    %v2030 = vpop.f32.mrf.mxu0
    %v2031 = vadd.f32 %v2017, %v2030
    %v2032 = vpop.f32.mrf.mxu0
    %v2033 = vadd.f32 %v2019, %v2032
    %2034 = vdwg.mxu0
    %2035 = vmatpush.bf16.msra.mxu0 %v1925
    %2036 = vmatpush.bf16.msra.mxu0 %v1923
    %2037 = vmatpush.bf16.msra.mxu0 %v1921
    %2038 = vmatpush.bf16.msra.mxu0 %v1919
    %2039 = vmatpush.bf16.msra.mxu0 %v1917
    %2040 = vmatpush.bf16.msra.mxu0 %v1915
    %2041 = vmatpush.bf16.msra.mxu0 %v1913
    %2042 = vmatpush.bf16.msra.mxu0 %v1911
    %2043 = vmatmul.bf16.gmra.mxu0 %v1615
    %v2044 = vpop.f32.mrf.mxu0
    %v2045 = vadd.f32 %v2031, %v2044
    %v2046 = vpop.f32.mrf.mxu0
    %v2047 = vadd.f32 %v2033, %v2046
    %2048 = vdwg.mxu0
    %2049 = vmatpush.bf16.msra.mxu0 %v1941
    %2050 = vmatpush.bf16.msra.mxu0 %v1939
    %2051 = vmatpush.bf16.msra.mxu0 %v1937
    %2052 = vmatpush.bf16.msra.mxu0 %v1935
    %2053 = vmatpush.bf16.msra.mxu0 %v1933
    %2054 = vmatpush.bf16.msra.mxu0 %v1931
    %2055 = vmatpush.bf16.msra.mxu0 %v1929
    %2056 = vmatpush.bf16.msra.mxu0 %v1927
    %2057 = vmatmul.bf16.gmra.mxu0 %v1616
    %v2058 = vpop.f32.mrf.mxu0
    %v2059 = vadd.f32 %v2045, %v2058
    %v2060 = vpop.f32.mrf.mxu0
    %v2061 = vadd.f32 %v2047, %v2060
    %2062 = vdwg.mxu0
    %2063 = vmatpush.bf16.msra.mxu0 %v1894
    %2064 = vmatpush.bf16.msra.mxu0 %v1892
    %2065 = vmatpush.bf16.msra.mxu0 %v1890
    %2066 = vmatpush.bf16.msra.mxu0 %v1888
    %2067 = vmatpush.bf16.msra.mxu0 %v1886
    %2068 = vmatpush.bf16.msra.mxu0 %v1884
    %2069 = vmatpush.bf16.msra.mxu0 %v1882
    %2070 = vmatpush.bf16.msra.mxu0 %v1880
    %2071 = vmatmul.bf16.gmra.mxu0 %v1613
    %v2072 = vpop.f32.mrf.mxu0
    %v2073 = vadd.f32 %v1684, %v2072
    %v2074 = vpop.f32.mrf.mxu0
    %v2075 = vadd.f32 %v1684, %v2074
    %2076 = vdwg.mxu0
    %2077 = vmatpush.bf16.msra.mxu0 %v1910
    %2078 = vmatpush.bf16.msra.mxu0 %v1908
    %2079 = vmatpush.bf16.msra.mxu0 %v1906
    %2080 = vmatpush.bf16.msra.mxu0 %v1904
    %2081 = vmatpush.bf16.msra.mxu0 %v1902
    %2082 = vmatpush.bf16.msra.mxu0 %v1900
    %2083 = vmatpush.bf16.msra.mxu0 %v1898
    %2084 = vmatpush.bf16.msra.mxu0 %v1896
    %2085 = vmatmul.bf16.gmra.mxu0 %v1614
    %v2086 = vpop.f32.mrf.mxu0
    %v2087 = vadd.f32 %v2073, %v2086
    %v2088 = vpop.f32.mrf.mxu0
    %v2089 = vadd.f32 %v2075, %v2088
    %2090 = vdwg.mxu0
    %2091 = vmatpush.bf16.msra.mxu0 %v1926
    %2092 = vmatpush.bf16.msra.mxu0 %v1924
    %2093 = vmatpush.bf16.msra.mxu0 %v1922
    %2094 = vmatpush.bf16.msra.mxu0 %v1920
    %2095 = vmatpush.bf16.msra.mxu0 %v1918
    %2096 = vmatpush.bf16.msra.mxu0 %v1916
    %2097 = vmatpush.bf16.msra.mxu0 %v1914
    %2098 = vmatpush.bf16.msra.mxu0 %v1912
    %2099 = vmatmul.bf16.gmra.mxu0 %v1615
    %v2100 = vpop.f32.mrf.mxu0
    %v2101 = vadd.f32 %v2087, %v2100
    %v2102 = vpop.f32.mrf.mxu0
    %v2103 = vadd.f32 %v2089, %v2102
    %2104 = vdwg.mxu0
    %2105 = vmatpush.bf16.msra.mxu0 %v1942
    %2106 = vmatpush.bf16.msra.mxu0 %v1940
    %2107 = vmatpush.bf16.msra.mxu0 %v1938
    %2108 = vmatpush.bf16.msra.mxu0 %v1936
    %2109 = vmatpush.bf16.msra.mxu0 %v1934
    %2110 = vmatpush.bf16.msra.mxu0 %v1932
    %2111 = vmatpush.bf16.msra.mxu0 %v1930
    %2112 = vmatpush.bf16.msra.mxu0 %v1928
    %2113 = vmatmul.bf16.gmra.mxu0 %v1616
    %v2114 = vpop.f32.mrf.mxu0
    %v2115 = vadd.f32 %v2101, %v2114
    %v2116 = vpop.f32.mrf.mxu0
    %v2117 = vadd.f32 %v2103, %v2116
    %2118 = vdwg.mxu0
    %v2119 = vmax.f32 %v2059, 0.0
    %v2120 = vmax.f32 %v2115, 0.0
    %v2121 = vmax.f32 %v2061, 0.0
    %v2122 = vmax.f32 %v2117, 0.0
    %v2123 = vld [vmem:[%s5] sm:$0x3]
    %v2125 = vperm.slane %v2123, 0
    %v2126 = vperm.slane %v2123, 1
    %v2129 = vmul.f32 %v2119, %v2125
    %v2130 = vmul.f32 %v2120, %v2126
    %v2131 = vmul.f32 %v2121, %v2125
    %v2132 = vmul.f32 %v2122, %v2126
    %v2133 = vadd.f32 %v2129, %v2130
    %v2134 = vadd.f32 %v2131, %v2132
    %2135 = vadd.xlane.f32.xlu0 %v2133
    %v2136 = vpop.xlane.xlu0 %2135
    %2137 = vadd.xlane.f32.xlu0 %v2134
    %v2138 = vpop.xlane.xlu0 %2137
    %v2139 = vld [vmem:[#allocation2] sm:$0x1]
    %v2141 = vperm.slane %v2139, 0
    %v2143 = vadd.f32 %v2136, %v2141
    %v2144 = vadd.f32 %v2138, %v2141
    %v2145 = vtanh.pop %v2143
    %v2146 = vtanh.pop %v2144
    %vm2147 = vcmask 7168
    %2148 = vst.msk [vmem:[%s7] sm:$0xff] %vm2147, %v2145
    %2149 = vst.msk [vmem:[%s7 + $0x8] sm:$0xff] %vm2147, %v2146
    // Predicated region
    $region46: #{chessnn_forward.1} parent=1 // pred_check
      _
    $region47: #{chessnn_forward.1} parent=1 // pred_check_branch
      %2151 = sbr.rel (0) target = $region49
    $region48: #{chessnn_forward.1} parent=1 // pred_region
      _
    $region49: #{chessnn_forward.1} parent=1 // pred_fallthru
      _
    // Predicated region
    $region50: #{chessnn_forward.1} parent=1 // pred_check
      _
    $region51: #{chessnn_forward.1} parent=1 // pred_check_branch
      %2153 = sbr.rel (0) target = $region53
    $region52: #{chessnn_forward.1} parent=1 // pred_region
      _
    $region53: #{chessnn_forward.1} parent=1 // pred_fallthru
      _
    %2154 = vsyncpa [#allocation4], 1
    %2155 = vsyncpa [#allocation6], 1
    %2156 = vsyncpa [#allocation9], 1

</llo_original>
